<compile_context>
chip_gen: v6e
topology: v6e:2x2x1
jax: 0.10.0
libtpu: 0.0.40
codegen_flags: <defaults>
</compile_context>

<pallas_src>
import jax
import jax.numpy as jnp
import numpy as np
from jax.experimental import pallas as pl
from jax.experimental.pallas import tpu as pltpu


def moe_head_kernel(q_ref, k_ref, x_ref,
                    wq_ref, bq_ref, wk_ref, bk_ref, wv_ref, bv_ref,
                    wg_ref, bg_ref, wo_ref, bo_ref,
                    o_ref):
    f32 = jnp.float32
    q = q_ref[0]          # (Tq, D)
    k = k_ref[0]          # (Tk, D)
    x = x_ref[0]          # (Tk, D)   raw `inputs` (also consumed at the end)
    n_heads = wq_ref.shape[0]

    probs = None          # gated sum of per-head attention maps, (Tq, Tk)
    for h in range(n_heads):                       # static unroll, N is small
        # per-head projections (weights pre-split per head in the wrapper)
        qh = jnp.dot(q, wq_ref[h], preferred_element_type=f32) + bq_ref[h]   # (Tq, Dh)
        kh = jnp.dot(k, wk_ref[h], preferred_element_type=f32) + bk_ref[h]   # (Tk, Dh)
        vh = jnp.dot(x, wv_ref[h], preferred_element_type=f32) + bv_ref[h]   # (Tk, Dh)

        # raw dot products (Attention with value=None: no scale, no softmax)
        s_h = jax.lax.dot_general(qh, kh, (((1,), (1,)), ((), ())),
                                  preferred_element_type=f32)                # (Tq, Tk)
        # head output mixed with values (inference dropout == identity)
        mix_h = jnp.dot(s_h, vh, preferred_element_type=f32)                 # (Tq, Dh)

        # shared gate Linear(Dh -> 1)
        g_h = jnp.sum(mix_h * wg_ref[...], axis=-1, keepdims=True) + bg_ref[...]  # (Tq, 1)

        # legacy F.softmax(dim=None) on (B,Tq,N,1) -> softmax over the Tq axis,
        # independently per head
        g_h = g_h - jnp.max(g_h, axis=0, keepdims=True)
        e_h = jnp.exp(g_h)
        gate_h = e_h / jnp.sum(e_h, axis=0, keepdims=True)                   # (Tq, 1)

        term = gate_h * s_h
        probs = term if probs is None else probs + term                      # (Tq, Tk)

    outputs = jnp.dot(probs, x, preferred_element_type=f32)                  # (Tq, D)
    out = jnp.dot(outputs, wo_ref[...], preferred_element_type=f32) + bo_ref[...]
    o_ref[0] = out.astype(o_ref.dtype)


def moe_head_forward(query, key, inputs, params, n_heads):
    """query: [B,Tq,D], key: [B,Tk,D], inputs: [B,Tk,D] (d_value == d_key).
    params: PyTorch-layout (Wq,bq,Wk,bk,Wv,bv,Wg,bg,Wo,bo) with W of shape
    (out_features, in_features). Returns [B, Tq, D]."""
    Wq, bq, Wk, bk, Wv, bv, Wg, bg, Wo, bo = params
    B, Tq, D = query.shape
    _, Tk, Dv = inputs.shape
    assert Dv == D and key.shape == (B, Tk, D)
    N = n_heads
    assert D % N == 0
    Dh = D // N

    # Pre-split projection weights per head: y_h = x @ W.T[:, h*Dh:(h+1)*Dh]
    def split_w(W):                                  # (D, D) torch layout
        return W.T.reshape(D, N, Dh).transpose(1, 0, 2)   # (N, D, Dh)

    def split_b(b):
        return b.reshape(N, 1, Dh)

    wq3, wk3, wv3 = split_w(Wq), split_w(Wk), split_w(Wv)
    bq3, bk3, bv3 = split_b(bq), split_b(bk), split_b(bv)
    wg2 = Wg.reshape(1, Dh)
    bg2 = bg.reshape(1, 1)
    wo2 = Wo.T                                       # (D, D)
    bo2 = bo.reshape(1, D)

    flops = int(B * (2 * Tq * D * D          # Wq
                     + 2 * Tk * D * D        # Wk
                     + 2 * Tk * D * D        # Wv
                     + 2 * Tq * Tk * D       # per-head q@k^T (summed over heads)
                     + 2 * Tq * Tk * D       # per-head s@v
                     + 2 * Tq * D            # gate
                     + 2 * Tq * Tk * N       # gated head sum
                     + 2 * Tq * Tk * D       # probs @ inputs
                     + 2 * Tq * D * D))      # Wo
    ce = pl.CostEstimate(
        flops=flops,
        transcendentals=int(B * Tq * N),
        bytes_accessed=int(4 * (2 * B * Tq * D + 2 * B * Tk * D
                                + 4 * D * D + 4 * D + Dh + 1)))

    out = pl.pallas_call(
        moe_head_kernel,
        out_shape=jax.ShapeDtypeStruct((B, Tq, D), query.dtype),
        grid_spec=pltpu.PrefetchScalarGridSpec(
            num_scalar_prefetch=0,
            grid=(B,),
            in_specs=[
                pl.BlockSpec((1, Tq, D), lambda b: (b, 0, 0)),   # query
                pl.BlockSpec((1, Tk, D), lambda b: (b, 0, 0)),   # key
                pl.BlockSpec((1, Tk, D), lambda b: (b, 0, 0)),   # inputs
                pl.BlockSpec((N, D, Dh), lambda b: (0, 0, 0)),   # Wq (per head)
                pl.BlockSpec((N, 1, Dh), lambda b: (0, 0, 0)),   # bq
                pl.BlockSpec((N, D, Dh), lambda b: (0, 0, 0)),   # Wk
                pl.BlockSpec((N, 1, Dh), lambda b: (0, 0, 0)),   # bk
                pl.BlockSpec((N, D, Dh), lambda b: (0, 0, 0)),   # Wv
                pl.BlockSpec((N, 1, Dh), lambda b: (0, 0, 0)),   # bv
                pl.BlockSpec((1, Dh), lambda b: (0, 0)),         # gate W
                pl.BlockSpec((1, 1), lambda b: (0, 0)),          # gate b
                pl.BlockSpec((D, D), lambda b: (0, 0)),          # Wo (transposed)
                pl.BlockSpec((1, D), lambda b: (0, 0)),          # bo
            ],
            out_specs=pl.BlockSpec((1, Tq, D), lambda b: (b, 0, 0)),
        ),
        compiler_params=pltpu.CompilerParams(
            dimension_semantics=("parallel",)),
        cost_estimate=ce,
    )(query, key, inputs, wq3, bq3, wk3, bk3, wv3, bv3, wg2, bg2, wo2, bo2)
    return out


def moe_head_ref(query, key, inputs, params, n_heads):
    """Pure-JAX reference mirroring the PyTorch forward (eval mode)."""
    Wq, bq, Wk, bk, Wv, bv, Wg, bg, Wo, bo = params
    q = query @ Wq.T + bq
    k = key @ Wk.T + bk
    v = inputs @ Wv.T + bv
    B, Tq, D = q.shape
    Tk = k.shape[1]
    N = n_heads
    Dh = D // N
    qh = q.reshape(B, Tq, N, Dh).transpose(0, 2, 1, 3)   # (B, N, Tq, Dh)
    kh = k.reshape(B, Tk, N, Dh).transpose(0, 2, 1, 3)
    vh = v.reshape(B, Tk, N, Dh).transpose(0, 2, 1, 3)
    s = jnp.einsum('bnqd,bnkd->bnqk', qh, kh)            # raw dot products
    mix = jnp.einsum('bnqk,bnkd->bnqd', s, vh)
    mix = mix.transpose(0, 2, 1, 3)                      # (B, Tq, N, Dh)
    g = jnp.einsum('bqnd,d->bqn', mix, Wg[0]) + bg[0]    # (B, Tq, N)
    gate = jax.nn.softmax(g, axis=1)                     # legacy implicit dim=1 (Tq)
    probs = jnp.einsum('bqn,bnqk->bqk', gate, s)
    outputs = jnp.einsum('bqk,bkd->bqd', probs, inputs)
    return outputs @ Wo.T + bo


if __name__ == "__main__":
    # Small shapes consistent with the module: d_key = d_value = 32, 4 heads,
    # batch=2, seq=8.
    B, Tq, Tk, D, N = 2, 8, 8, 32, 4

    root = jax.random.PRNGKey(0)
    ks = jax.random.split(root, 13)
    query = jax.random.normal(ks[0], (B, Tq, D), dtype=jnp.float32)
    key_ = jax.random.normal(ks[1], (B, Tk, D), dtype=jnp.float32)
    inputs = jax.random.normal(ks[2], (B, Tk, D), dtype=jnp.float32)

    def init_linear(kw, kb, out_f, in_f):
        # nn.Linear default init: U(-1/sqrt(in), 1/sqrt(in))
        bound = 1.0 / np.sqrt(in_f)
        W = jax.random.uniform(kw, (out_f, in_f), minval=-bound, maxval=bound,
                               dtype=jnp.float32)
        b = jax.random.uniform(kb, (out_f,), minval=-bound, maxval=bound,
                               dtype=jnp.float32)
        return W, b

    Wq, bq = init_linear(ks[3], ks[4], D, D)
    Wk, bk = init_linear(ks[5], ks[6], D, D)
    Wv, bv = init_linear(ks[7], ks[8], D, D)
    Wg, bg = init_linear(ks[9], ks[10], 1, D // N)
    Wo, bo = init_linear(ks[11], ks[12], D, D)
    params = (Wq, bq, Wk, bk, Wv, bv, Wg, bg, Wo, bo)

    out = moe_head_forward(query, key_, inputs, params, N)
    out = jax.block_until_ready(out)

    ref = moe_head_ref(query, key_, inputs, params, N)
    np.testing.assert_allclose(np.asarray(out), np.asarray(ref),
                               rtol=1e-4, atol=1e-4)
    assert out.shape == (B, Tq, D)
    print("KERNEL_OK")
</pallas_src>

<mosaic_0001>
module attributes {stable_mosaic.version = 11 : i64} {
  func.func @moe_head_kernel(%arg0: i32, %arg1: memref<1x8x32xf32, #tpu.memory_space<vmem>>, %arg2: memref<1x8x32xf32, #tpu.memory_space<vmem>>, %arg3: memref<1x8x32xf32, #tpu.memory_space<vmem>>, %arg4: memref<4x32x8xf32, #tpu.memory_space<vmem>>, %arg5: memref<4x1x8xf32, #tpu.memory_space<vmem>>, %arg6: memref<4x32x8xf32, #tpu.memory_space<vmem>>, %arg7: memref<4x1x8xf32, #tpu.memory_space<vmem>>, %arg8: memref<4x32x8xf32, #tpu.memory_space<vmem>>, %arg9: memref<4x1x8xf32, #tpu.memory_space<vmem>>, %arg10: memref<1x8xf32, #tpu.memory_space<vmem>>, %arg11: memref<1x1xf32, #tpu.memory_space<vmem>>, %arg12: memref<32x32xf32, #tpu.memory_space<vmem>>, %arg13: memref<1x32xf32, #tpu.memory_space<vmem>>, %arg14: memref<1x8x32xf32, #tpu.memory_space<vmem>>) attributes {dimension_semantics = [#tpu.dimension_semantics<parallel>], iteration_bounds = array<i64: 2>, scalar_prefetch = 0 : i64, scratch_operands = 0 : i64, tpu.core_type = #tpu.core_type<tc>, window_params = [{transform_indices = @transform_0, window_bounds = array<i64: 1, 8, 32>}, {transform_indices = @transform_1, window_bounds = array<i64: 1, 8, 32>}, {transform_indices = @transform_2, window_bounds = array<i64: 1, 8, 32>}, {pipeline_mode = #tpu.pipeline_mode<synchronous>, transform_indices = @transform_3, window_bounds = array<i64: 4, 32, 8>}, {pipeline_mode = #tpu.pipeline_mode<synchronous>, transform_indices = @transform_4, window_bounds = array<i64: 4, 1, 8>}, {pipeline_mode = #tpu.pipeline_mode<synchronous>, transform_indices = @transform_5, window_bounds = array<i64: 4, 32, 8>}, {pipeline_mode = #tpu.pipeline_mode<synchronous>, transform_indices = @transform_6, window_bounds = array<i64: 4, 1, 8>}, {pipeline_mode = #tpu.pipeline_mode<synchronous>, transform_indices = @transform_7, window_bounds = array<i64: 4, 32, 8>}, {pipeline_mode = #tpu.pipeline_mode<synchronous>, transform_indices = @transform_8, window_bounds = array<i64: 4, 1, 8>}, {pipeline_mode = #tpu.pipeline_mode<synchronous>, transform_indices = @transform_9, window_bounds = array<i64: 1, 8>}, {pipeline_mode = #tpu.pipeline_mode<synchronous>, transform_indices = @transform_10, window_bounds = array<i64: 1, 1>}, {pipeline_mode = #tpu.pipeline_mode<synchronous>, transform_indices = @transform_11, window_bounds = array<i64: 32, 32>}, {pipeline_mode = #tpu.pipeline_mode<synchronous>, transform_indices = @transform_12, window_bounds = array<i64: 1, 32>}, {transform_indices = @transform_13, window_bounds = array<i64: 1, 8, 32>}]} {
    %c0 = arith.constant 0 : index
    %c0_0 = arith.constant 0 : index
    %c0_1 = arith.constant 0 : index
    %0 = vector.load %arg1[%c0, %c0_0, %c0_1] : memref<1x8x32xf32, #tpu.memory_space<vmem>>, vector<1x8x32xf32>
    %1 = vector.shape_cast %0 : vector<1x8x32xf32> to vector<8x32xf32>
    %c0_2 = arith.constant 0 : index
    %c0_3 = arith.constant 0 : index
    %c0_4 = arith.constant 0 : index
    %2 = vector.load %arg2[%c0_2, %c0_3, %c0_4] : memref<1x8x32xf32, #tpu.memory_space<vmem>>, vector<1x8x32xf32>
    %3 = vector.shape_cast %2 : vector<1x8x32xf32> to vector<8x32xf32>
    %c0_5 = arith.constant 0 : index
    %c0_6 = arith.constant 0 : index
    %c0_7 = arith.constant 0 : index
    %4 = vector.load %arg3[%c0_5, %c0_6, %c0_7] : memref<1x8x32xf32, #tpu.memory_space<vmem>>, vector<1x8x32xf32>
    %5 = vector.shape_cast %4 : vector<1x8x32xf32> to vector<8x32xf32>
    %c0_8 = arith.constant 0 : index
    %c0_9 = arith.constant 0 : index
    %c0_10 = arith.constant 0 : index
    %6 = vector.load %arg4[%c0_8, %c0_9, %c0_10] : memref<4x32x8xf32, #tpu.memory_space<vmem>>, vector<1x32x8xf32>
    %7 = vector.shape_cast %6 : vector<1x32x8xf32> to vector<32x8xf32>
    %cst = arith.constant dense<0.000000e+00> : vector<8x8xf32>
    %8 = tpu.matmul %1, %7, %cst {dimension_numbers = #tpu.dot_dimension_numbers<[1], [0], [0], [1], [0, 0, 1, 1], [], []>} : vector<8x32xf32>, vector<32x8xf32>, vector<8x8xf32> -> vector<8x8xf32>
    %c0_11 = arith.constant 0 : index
    %c0_12 = arith.constant 0 : index
    %c0_13 = arith.constant 0 : index
    %9 = vector.load %arg5[%c0_11, %c0_12, %c0_13] : memref<4x1x8xf32, #tpu.memory_space<vmem>>, vector<1x1x8xf32>
    %10 = vector.shape_cast %9 : vector<1x1x8xf32> to vector<1x8xf32>
    %11 = vector.broadcast %10 : vector<1x8xf32> to vector<8x8xf32>
    %12 = arith.addf %8, %11 : vector<8x8xf32>
    %c0_14 = arith.constant 0 : index
    %c0_15 = arith.constant 0 : index
    %c0_16 = arith.constant 0 : index
    %13 = vector.load %arg6[%c0_14, %c0_15, %c0_16] : memref<4x32x8xf32, #tpu.memory_space<vmem>>, vector<1x32x8xf32>
    %14 = vector.shape_cast %13 : vector<1x32x8xf32> to vector<32x8xf32>
    %cst_17 = arith.constant dense<0.000000e+00> : vector<8x8xf32>
    %15 = tpu.matmul %3, %14, %cst_17 {dimension_numbers = #tpu.dot_dimension_numbers<[1], [0], [0], [1], [0, 0, 1, 1], [], []>} : vector<8x32xf32>, vector<32x8xf32>, vector<8x8xf32> -> vector<8x8xf32>
    %c0_18 = arith.constant 0 : index
    %c0_19 = arith.constant 0 : index
    %c0_20 = arith.constant 0 : index
    %16 = vector.load %arg7[%c0_18, %c0_19, %c0_20] : memref<4x1x8xf32, #tpu.memory_space<vmem>>, vector<1x1x8xf32>
    %17 = vector.shape_cast %16 : vector<1x1x8xf32> to vector<1x8xf32>
    %18 = vector.broadcast %17 : vector<1x8xf32> to vector<8x8xf32>
    %19 = arith.addf %15, %18 : vector<8x8xf32>
    %c0_21 = arith.constant 0 : index
    %c0_22 = arith.constant 0 : index
    %c0_23 = arith.constant 0 : index
    %20 = vector.load %arg8[%c0_21, %c0_22, %c0_23] : memref<4x32x8xf32, #tpu.memory_space<vmem>>, vector<1x32x8xf32>
    %21 = vector.shape_cast %20 : vector<1x32x8xf32> to vector<32x8xf32>
    %cst_24 = arith.constant dense<0.000000e+00> : vector<8x8xf32>
    %22 = tpu.matmul %5, %21, %cst_24 {dimension_numbers = #tpu.dot_dimension_numbers<[1], [0], [0], [1], [0, 0, 1, 1], [], []>} : vector<8x32xf32>, vector<32x8xf32>, vector<8x8xf32> -> vector<8x8xf32>
    %c0_25 = arith.constant 0 : index
    %c0_26 = arith.constant 0 : index
    %c0_27 = arith.constant 0 : index
    %23 = vector.load %arg9[%c0_25, %c0_26, %c0_27] : memref<4x1x8xf32, #tpu.memory_space<vmem>>, vector<1x1x8xf32>
    %24 = vector.shape_cast %23 : vector<1x1x8xf32> to vector<1x8xf32>
    %25 = vector.broadcast %24 : vector<1x8xf32> to vector<8x8xf32>
    %26 = arith.addf %22, %25 : vector<8x8xf32>
    %cst_28 = arith.constant dense<0.000000e+00> : vector<8x8xf32>
    %27 = tpu.matmul %12, %19, %cst_28 {dimension_numbers = #tpu.dot_dimension_numbers<[1], [1], [0], [0], [0, 0, 1, 0], [], []>} : vector<8x8xf32>, vector<8x8xf32>, vector<8x8xf32> -> vector<8x8xf32>
    %cst_29 = arith.constant dense<0.000000e+00> : vector<8x8xf32>
    %28 = tpu.matmul %27, %26, %cst_29 {dimension_numbers = #tpu.dot_dimension_numbers<[1], [0], [0], [1], [0, 0, 1, 1], [], []>} : vector<8x8xf32>, vector<8x8xf32>, vector<8x8xf32> -> vector<8x8xf32>
    %c0_30 = arith.constant 0 : index
    %c0_31 = arith.constant 0 : index
    %29 = vector.load %arg10[%c0_30, %c0_31] : memref<1x8xf32, #tpu.memory_space<vmem>>, vector<1x8xf32>
    %30 = vector.broadcast %29 : vector<1x8xf32> to vector<8x8xf32>
    %31 = arith.mulf %28, %30 : vector<8x8xf32>
    %cst_32 = arith.constant dense<0.000000e+00> : vector<8xf32>
    %32 = vector.multi_reduction <add>, %31, %cst_32 [1] : vector<8x8xf32> to vector<8xf32>
    %33 = vector.shape_cast %32 : vector<8xf32> to vector<8x1xf32>
    %c0_33 = arith.constant 0 : index
    %c0_34 = arith.constant 0 : index
    %34 = vector.load %arg11[%c0_33, %c0_34] : memref<1x1xf32, #tpu.memory_space<vmem>>, vector<1x1xf32>
    %35 = vector.broadcast %34 : vector<1x1xf32> to vector<8x1xf32>
    %36 = arith.addf %33, %35 : vector<8x1xf32>
    %cst_35 = arith.constant dense<0xFF800000> : vector<1xf32>
    %37 = vector.multi_reduction <maximumf>, %36, %cst_35 [0] : vector<8x1xf32> to vector<1xf32>
    %38 = vector.shape_cast %37 : vector<1xf32> to vector<1x1xf32>
    %39 = vector.broadcast %38 : vector<1x1xf32> to vector<8x1xf32>
    %40 = arith.subf %36, %39 : vector<8x1xf32>
    %41 = math.exp %40 : vector<8x1xf32>
    %cst_36 = arith.constant dense<0.000000e+00> : vector<1xf32>
    %42 = vector.multi_reduction <add>, %41, %cst_36 [0] : vector<8x1xf32> to vector<1xf32>
    %43 = vector.shape_cast %42 : vector<1xf32> to vector<1x1xf32>
    %44 = vector.broadcast %43 : vector<1x1xf32> to vector<8x1xf32>
    %45 = arith.divf %41, %44 : vector<8x1xf32>
    %46 = vector.broadcast %45 : vector<8x1xf32> to vector<8x8xf32>
    %47 = arith.mulf %46, %27 : vector<8x8xf32>
    %c1 = arith.constant 1 : index
    %c0_37 = arith.constant 0 : index
    %c0_38 = arith.constant 0 : index
    %48 = vector.load %arg4[%c1, %c0_37, %c0_38] : memref<4x32x8xf32, #tpu.memory_space<vmem>>, vector<1x32x8xf32>
    %49 = vector.shape_cast %48 : vector<1x32x8xf32> to vector<32x8xf32>
    %cst_39 = arith.constant dense<0.000000e+00> : vector<8x8xf32>
    %50 = tpu.matmul %1, %49, %cst_39 {dimension_numbers = #tpu.dot_dimension_numbers<[1], [0], [0], [1], [0, 0, 1, 1], [], []>} : vector<8x32xf32>, vector<32x8xf32>, vector<8x8xf32> -> vector<8x8xf32>
    %c1_40 = arith.constant 1 : index
    %c0_41 = arith.constant 0 : index
    %c0_42 = arith.constant 0 : index
    %51 = vector.load %arg5[%c1_40, %c0_41, %c0_42] : memref<4x1x8xf32, #tpu.memory_space<vmem>>, vector<1x1x8xf32>
    %52 = vector.shape_cast %51 : vector<1x1x8xf32> to vector<1x8xf32>
    %53 = vector.broadcast %52 : vector<1x8xf32> to vector<8x8xf32>
    %54 = arith.addf %50, %53 : vector<8x8xf32>
    %c1_43 = arith.constant 1 : index
    %c0_44 = arith.constant 0 : index
    %c0_45 = arith.constant 0 : index
    %55 = vector.load %arg6[%c1_43, %c0_44, %c0_45] : memref<4x32x8xf32, #tpu.memory_space<vmem>>, vector<1x32x8xf32>
    %56 = vector.shape_cast %55 : vector<1x32x8xf32> to vector<32x8xf32>
    %cst_46 = arith.constant dense<0.000000e+00> : vector<8x8xf32>
    %57 = tpu.matmul %3, %56, %cst_46 {dimension_numbers = #tpu.dot_dimension_numbers<[1], [0], [0], [1], [0, 0, 1, 1], [], []>} : vector<8x32xf32>, vector<32x8xf32>, vector<8x8xf32> -> vector<8x8xf32>
    %c1_47 = arith.constant 1 : index
    %c0_48 = arith.constant 0 : index
    %c0_49 = arith.constant 0 : index
    %58 = vector.load %arg7[%c1_47, %c0_48, %c0_49] : memref<4x1x8xf32, #tpu.memory_space<vmem>>, vector<1x1x8xf32>
    %59 = vector.shape_cast %58 : vector<1x1x8xf32> to vector<1x8xf32>
    %60 = vector.broadcast %59 : vector<1x8xf32> to vector<8x8xf32>
    %61 = arith.addf %57, %60 : vector<8x8xf32>
    %c1_50 = arith.constant 1 : index
    %c0_51 = arith.constant 0 : index
    %c0_52 = arith.constant 0 : index
    %62 = vector.load %arg8[%c1_50, %c0_51, %c0_52] : memref<4x32x8xf32, #tpu.memory_space<vmem>>, vector<1x32x8xf32>
    %63 = vector.shape_cast %62 : vector<1x32x8xf32> to vector<32x8xf32>
    %cst_53 = arith.constant dense<0.000000e+00> : vector<8x8xf32>
    %64 = tpu.matmul %5, %63, %cst_53 {dimension_numbers = #tpu.dot_dimension_numbers<[1], [0], [0], [1], [0, 0, 1, 1], [], []>} : vector<8x32xf32>, vector<32x8xf32>, vector<8x8xf32> -> vector<8x8xf32>
    %c1_54 = arith.constant 1 : index
    %c0_55 = arith.constant 0 : index
    %c0_56 = arith.constant 0 : index
    %65 = vector.load %arg9[%c1_54, %c0_55, %c0_56] : memref<4x1x8xf32, #tpu.memory_space<vmem>>, vector<1x1x8xf32>
    %66 = vector.shape_cast %65 : vector<1x1x8xf32> to vector<1x8xf32>
    %67 = vector.broadcast %66 : vector<1x8xf32> to vector<8x8xf32>
    %68 = arith.addf %64, %67 : vector<8x8xf32>
    %cst_57 = arith.constant dense<0.000000e+00> : vector<8x8xf32>
    %69 = tpu.matmul %54, %61, %cst_57 {dimension_numbers = #tpu.dot_dimension_numbers<[1], [1], [0], [0], [0, 0, 1, 0], [], []>} : vector<8x8xf32>, vector<8x8xf32>, vector<8x8xf32> -> vector<8x8xf32>
    %cst_58 = arith.constant dense<0.000000e+00> : vector<8x8xf32>
    %70 = tpu.matmul %69, %68, %cst_58 {dimension_numbers = #tpu.dot_dimension_numbers<[1], [0], [0], [1], [0, 0, 1, 1], [], []>} : vector<8x8xf32>, vector<8x8xf32>, vector<8x8xf32> -> vector<8x8xf32>
    %c0_59 = arith.constant 0 : index
    %c0_60 = arith.constant 0 : index
    %71 = vector.load %arg10[%c0_59, %c0_60] : memref<1x8xf32, #tpu.memory_space<vmem>>, vector<1x8xf32>
    %72 = vector.broadcast %71 : vector<1x8xf32> to vector<8x8xf32>
    %73 = arith.mulf %70, %72 : vector<8x8xf32>
    %cst_61 = arith.constant dense<0.000000e+00> : vector<8xf32>
    %74 = vector.multi_reduction <add>, %73, %cst_61 [1] : vector<8x8xf32> to vector<8xf32>
    %75 = vector.shape_cast %74 : vector<8xf32> to vector<8x1xf32>
    %c0_62 = arith.constant 0 : index
    %c0_63 = arith.constant 0 : index
    %76 = vector.load %arg11[%c0_62, %c0_63] : memref<1x1xf32, #tpu.memory_space<vmem>>, vector<1x1xf32>
    %77 = vector.broadcast %76 : vector<1x1xf32> to vector<8x1xf32>
    %78 = arith.addf %75, %77 : vector<8x1xf32>
    %cst_64 = arith.constant dense<0xFF800000> : vector<1xf32>
    %79 = vector.multi_reduction <maximumf>, %78, %cst_64 [0] : vector<8x1xf32> to vector<1xf32>
    %80 = vector.shape_cast %79 : vector<1xf32> to vector<1x1xf32>
    %81 = vector.broadcast %80 : vector<1x1xf32> to vector<8x1xf32>
    %82 = arith.subf %78, %81 : vector<8x1xf32>
    %83 = math.exp %82 : vector<8x1xf32>
    %cst_65 = arith.constant dense<0.000000e+00> : vector<1xf32>
    %84 = vector.multi_reduction <add>, %83, %cst_65 [0] : vector<8x1xf32> to vector<1xf32>
    %85 = vector.shape_cast %84 : vector<1xf32> to vector<1x1xf32>
    %86 = vector.broadcast %85 : vector<1x1xf32> to vector<8x1xf32>
    %87 = arith.divf %83, %86 : vector<8x1xf32>
    %88 = vector.broadcast %87 : vector<8x1xf32> to vector<8x8xf32>
    %89 = arith.mulf %88, %69 : vector<8x8xf32>
    %90 = arith.addf %47, %89 : vector<8x8xf32>
    %c2 = arith.constant 2 : index
    %c0_66 = arith.constant 0 : index
    %c0_67 = arith.constant 0 : index
    %91 = vector.load %arg4[%c2, %c0_66, %c0_67] : memref<4x32x8xf32, #tpu.memory_space<vmem>>, vector<1x32x8xf32>
    %92 = vector.shape_cast %91 : vector<1x32x8xf32> to vector<32x8xf32>
    %cst_68 = arith.constant dense<0.000000e+00> : vector<8x8xf32>
    %93 = tpu.matmul %1, %92, %cst_68 {dimension_numbers = #tpu.dot_dimension_numbers<[1], [0], [0], [1], [0, 0, 1, 1], [], []>} : vector<8x32xf32>, vector<32x8xf32>, vector<8x8xf32> -> vector<8x8xf32>
    %c2_69 = arith.constant 2 : index
    %c0_70 = arith.constant 0 : index
    %c0_71 = arith.constant 0 : index
    %94 = vector.load %arg5[%c2_69, %c0_70, %c0_71] : memref<4x1x8xf32, #tpu.memory_space<vmem>>, vector<1x1x8xf32>
    %95 = vector.shape_cast %94 : vector<1x1x8xf32> to vector<1x8xf32>
    %96 = vector.broadcast %95 : vector<1x8xf32> to vector<8x8xf32>
    %97 = arith.addf %93, %96 : vector<8x8xf32>
    %c2_72 = arith.constant 2 : index
    %c0_73 = arith.constant 0 : index
    %c0_74 = arith.constant 0 : index
    %98 = vector.load %arg6[%c2_72, %c0_73, %c0_74] : memref<4x32x8xf32, #tpu.memory_space<vmem>>, vector<1x32x8xf32>
    %99 = vector.shape_cast %98 : vector<1x32x8xf32> to vector<32x8xf32>
    %cst_75 = arith.constant dense<0.000000e+00> : vector<8x8xf32>
    %100 = tpu.matmul %3, %99, %cst_75 {dimension_numbers = #tpu.dot_dimension_numbers<[1], [0], [0], [1], [0, 0, 1, 1], [], []>} : vector<8x32xf32>, vector<32x8xf32>, vector<8x8xf32> -> vector<8x8xf32>
    %c2_76 = arith.constant 2 : index
    %c0_77 = arith.constant 0 : index
    %c0_78 = arith.constant 0 : index
    %101 = vector.load %arg7[%c2_76, %c0_77, %c0_78] : memref<4x1x8xf32, #tpu.memory_space<vmem>>, vector<1x1x8xf32>
    %102 = vector.shape_cast %101 : vector<1x1x8xf32> to vector<1x8xf32>
    %103 = vector.broadcast %102 : vector<1x8xf32> to vector<8x8xf32>
    %104 = arith.addf %100, %103 : vector<8x8xf32>
    %c2_79 = arith.constant 2 : index
    %c0_80 = arith.constant 0 : index
    %c0_81 = arith.constant 0 : index
    %105 = vector.load %arg8[%c2_79, %c0_80, %c0_81] : memref<4x32x8xf32, #tpu.memory_space<vmem>>, vector<1x32x8xf32>
    %106 = vector.shape_cast %105 : vector<1x32x8xf32> to vector<32x8xf32>
    %cst_82 = arith.constant dense<0.000000e+00> : vector<8x8xf32>
    %107 = tpu.matmul %5, %106, %cst_82 {dimension_numbers = #tpu.dot_dimension_numbers<[1], [0], [0], [1], [0, 0, 1, 1], [], []>} : vector<8x32xf32>, vector<32x8xf32>, vector<8x8xf32> -> vector<8x8xf32>
    %c2_83 = arith.constant 2 : index
    %c0_84 = arith.constant 0 : index
    %c0_85 = arith.constant 0 : index
    %108 = vector.load %arg9[%c2_83, %c0_84, %c0_85] : memref<4x1x8xf32, #tpu.memory_space<vmem>>, vector<1x1x8xf32>
    %109 = vector.shape_cast %108 : vector<1x1x8xf32> to vector<1x8xf32>
    %110 = vector.broadcast %109 : vector<1x8xf32> to vector<8x8xf32>
    %111 = arith.addf %107, %110 : vector<8x8xf32>
    %cst_86 = arith.constant dense<0.000000e+00> : vector<8x8xf32>
    %112 = tpu.matmul %97, %104, %cst_86 {dimension_numbers = #tpu.dot_dimension_numbers<[1], [1], [0], [0], [0, 0, 1, 0], [], []>} : vector<8x8xf32>, vector<8x8xf32>, vector<8x8xf32> -> vector<8x8xf32>
    %cst_87 = arith.constant dense<0.000000e+00> : vector<8x8xf32>
    %113 = tpu.matmul %112, %111, %cst_87 {dimension_numbers = #tpu.dot_dimension_numbers<[1], [0], [0], [1], [0, 0, 1, 1], [], []>} : vector<8x8xf32>, vector<8x8xf32>, vector<8x8xf32> -> vector<8x8xf32>
    %c0_88 = arith.constant 0 : index
    %c0_89 = arith.constant 0 : index
    %114 = vector.load %arg10[%c0_88, %c0_89] : memref<1x8xf32, #tpu.memory_space<vmem>>, vector<1x8xf32>
    %115 = vector.broadcast %114 : vector<1x8xf32> to vector<8x8xf32>
    %116 = arith.mulf %113, %115 : vector<8x8xf32>
    %cst_90 = arith.constant dense<0.000000e+00> : vector<8xf32>
    %117 = vector.multi_reduction <add>, %116, %cst_90 [1] : vector<8x8xf32> to vector<8xf32>
    %118 = vector.shape_cast %117 : vector<8xf32> to vector<8x1xf32>
    %c0_91 = arith.constant 0 : index
    %c0_92 = arith.constant 0 : index
    %119 = vector.load %arg11[%c0_91, %c0_92] : memref<1x1xf32, #tpu.memory_space<vmem>>, vector<1x1xf32>
    %120 = vector.broadcast %119 : vector<1x1xf32> to vector<8x1xf32>
    %121 = arith.addf %118, %120 : vector<8x1xf32>
    %cst_93 = arith.constant dense<0xFF800000> : vector<1xf32>
    %122 = vector.multi_reduction <maximumf>, %121, %cst_93 [0] : vector<8x1xf32> to vector<1xf32>
    %123 = vector.shape_cast %122 : vector<1xf32> to vector<1x1xf32>
    %124 = vector.broadcast %123 : vector<1x1xf32> to vector<8x1xf32>
    %125 = arith.subf %121, %124 : vector<8x1xf32>
    %126 = math.exp %125 : vector<8x1xf32>
    %cst_94 = arith.constant dense<0.000000e+00> : vector<1xf32>
    %127 = vector.multi_reduction <add>, %126, %cst_94 [0] : vector<8x1xf32> to vector<1xf32>
    %128 = vector.shape_cast %127 : vector<1xf32> to vector<1x1xf32>
    %129 = vector.broadcast %128 : vector<1x1xf32> to vector<8x1xf32>
    %130 = arith.divf %126, %129 : vector<8x1xf32>
    %131 = vector.broadcast %130 : vector<8x1xf32> to vector<8x8xf32>
    %132 = arith.mulf %131, %112 : vector<8x8xf32>
    %133 = arith.addf %90, %132 : vector<8x8xf32>
    %c3 = arith.constant 3 : index
    %c0_95 = arith.constant 0 : index
    %c0_96 = arith.constant 0 : index
    %134 = vector.load %arg4[%c3, %c0_95, %c0_96] : memref<4x32x8xf32, #tpu.memory_space<vmem>>, vector<1x32x8xf32>
    %135 = vector.shape_cast %134 : vector<1x32x8xf32> to vector<32x8xf32>
    %cst_97 = arith.constant dense<0.000000e+00> : vector<8x8xf32>
    %136 = tpu.matmul %1, %135, %cst_97 {dimension_numbers = #tpu.dot_dimension_numbers<[1], [0], [0], [1], [0, 0, 1, 1], [], []>} : vector<8x32xf32>, vector<32x8xf32>, vector<8x8xf32> -> vector<8x8xf32>
    %c3_98 = arith.constant 3 : index
    %c0_99 = arith.constant 0 : index
    %c0_100 = arith.constant 0 : index
    %137 = vector.load %arg5[%c3_98, %c0_99, %c0_100] : memref<4x1x8xf32, #tpu.memory_space<vmem>>, vector<1x1x8xf32>
    %138 = vector.shape_cast %137 : vector<1x1x8xf32> to vector<1x8xf32>
    %139 = vector.broadcast %138 : vector<1x8xf32> to vector<8x8xf32>
    %140 = arith.addf %136, %139 : vector<8x8xf32>
    %c3_101 = arith.constant 3 : index
    %c0_102 = arith.constant 0 : index
    %c0_103 = arith.constant 0 : index
    %141 = vector.load %arg6[%c3_101, %c0_102, %c0_103] : memref<4x32x8xf32, #tpu.memory_space<vmem>>, vector<1x32x8xf32>
    %142 = vector.shape_cast %141 : vector<1x32x8xf32> to vector<32x8xf32>
    %cst_104 = arith.constant dense<0.000000e+00> : vector<8x8xf32>
    %143 = tpu.matmul %3, %142, %cst_104 {dimension_numbers = #tpu.dot_dimension_numbers<[1], [0], [0], [1], [0, 0, 1, 1], [], []>} : vector<8x32xf32>, vector<32x8xf32>, vector<8x8xf32> -> vector<8x8xf32>
    %c3_105 = arith.constant 3 : index
    %c0_106 = arith.constant 0 : index
    %c0_107 = arith.constant 0 : index
    %144 = vector.load %arg7[%c3_105, %c0_106, %c0_107] : memref<4x1x8xf32, #tpu.memory_space<vmem>>, vector<1x1x8xf32>
    %145 = vector.shape_cast %144 : vector<1x1x8xf32> to vector<1x8xf32>
    %146 = vector.broadcast %145 : vector<1x8xf32> to vector<8x8xf32>
    %147 = arith.addf %143, %146 : vector<8x8xf32>
    %c3_108 = arith.constant 3 : index
    %c0_109 = arith.constant 0 : index
    %c0_110 = arith.constant 0 : index
    %148 = vector.load %arg8[%c3_108, %c0_109, %c0_110] : memref<4x32x8xf32, #tpu.memory_space<vmem>>, vector<1x32x8xf32>
    %149 = vector.shape_cast %148 : vector<1x32x8xf32> to vector<32x8xf32>
    %cst_111 = arith.constant dense<0.000000e+00> : vector<8x8xf32>
    %150 = tpu.matmul %5, %149, %cst_111 {dimension_numbers = #tpu.dot_dimension_numbers<[1], [0], [0], [1], [0, 0, 1, 1], [], []>} : vector<8x32xf32>, vector<32x8xf32>, vector<8x8xf32> -> vector<8x8xf32>
    %c3_112 = arith.constant 3 : index
    %c0_113 = arith.constant 0 : index
    %c0_114 = arith.constant 0 : index
    %151 = vector.load %arg9[%c3_112, %c0_113, %c0_114] : memref<4x1x8xf32, #tpu.memory_space<vmem>>, vector<1x1x8xf32>
    %152 = vector.shape_cast %151 : vector<1x1x8xf32> to vector<1x8xf32>
    %153 = vector.broadcast %152 : vector<1x8xf32> to vector<8x8xf32>
    %154 = arith.addf %150, %153 : vector<8x8xf32>
    %cst_115 = arith.constant dense<0.000000e+00> : vector<8x8xf32>
    %155 = tpu.matmul %140, %147, %cst_115 {dimension_numbers = #tpu.dot_dimension_numbers<[1], [1], [0], [0], [0, 0, 1, 0], [], []>} : vector<8x8xf32>, vector<8x8xf32>, vector<8x8xf32> -> vector<8x8xf32>
    %cst_116 = arith.constant dense<0.000000e+00> : vector<8x8xf32>
    %156 = tpu.matmul %155, %154, %cst_116 {dimension_numbers = #tpu.dot_dimension_numbers<[1], [0], [0], [1], [0, 0, 1, 1], [], []>} : vector<8x8xf32>, vector<8x8xf32>, vector<8x8xf32> -> vector<8x8xf32>
    %c0_117 = arith.constant 0 : index
    %c0_118 = arith.constant 0 : index
    %157 = vector.load %arg10[%c0_117, %c0_118] : memref<1x8xf32, #tpu.memory_space<vmem>>, vector<1x8xf32>
    %158 = vector.broadcast %157 : vector<1x8xf32> to vector<8x8xf32>
    %159 = arith.mulf %156, %158 : vector<8x8xf32>
    %cst_119 = arith.constant dense<0.000000e+00> : vector<8xf32>
    %160 = vector.multi_reduction <add>, %159, %cst_119 [1] : vector<8x8xf32> to vector<8xf32>
    %161 = vector.shape_cast %160 : vector<8xf32> to vector<8x1xf32>
    %c0_120 = arith.constant 0 : index
    %c0_121 = arith.constant 0 : index
    %162 = vector.load %arg11[%c0_120, %c0_121] : memref<1x1xf32, #tpu.memory_space<vmem>>, vector<1x1xf32>
    %163 = vector.broadcast %162 : vector<1x1xf32> to vector<8x1xf32>
    %164 = arith.addf %161, %163 : vector<8x1xf32>
    %cst_122 = arith.constant dense<0xFF800000> : vector<1xf32>
    %165 = vector.multi_reduction <maximumf>, %164, %cst_122 [0] : vector<8x1xf32> to vector<1xf32>
    %166 = vector.shape_cast %165 : vector<1xf32> to vector<1x1xf32>
    %167 = vector.broadcast %166 : vector<1x1xf32> to vector<8x1xf32>
    %168 = arith.subf %164, %167 : vector<8x1xf32>
    %169 = math.exp %168 : vector<8x1xf32>
    %cst_123 = arith.constant dense<0.000000e+00> : vector<1xf32>
    %170 = vector.multi_reduction <add>, %169, %cst_123 [0] : vector<8x1xf32> to vector<1xf32>
    %171 = vector.shape_cast %170 : vector<1xf32> to vector<1x1xf32>
    %172 = vector.broadcast %171 : vector<1x1xf32> to vector<8x1xf32>
    %173 = arith.divf %169, %172 : vector<8x1xf32>
    %174 = vector.broadcast %173 : vector<8x1xf32> to vector<8x8xf32>
    %175 = arith.mulf %174, %155 : vector<8x8xf32>
    %176 = arith.addf %133, %175 : vector<8x8xf32>
    %cst_124 = arith.constant dense<0.000000e+00> : vector<8x32xf32>
    %177 = tpu.matmul %176, %5, %cst_124 {dimension_numbers = #tpu.dot_dimension_numbers<[1], [0], [0], [1], [0, 0, 1, 1], [], []>} : vector<8x8xf32>, vector<8x32xf32>, vector<8x32xf32> -> vector<8x32xf32>
    %c0_125 = arith.constant 0 : index
    %c0_126 = arith.constant 0 : index
    %178 = vector.load %arg12[%c0_125, %c0_126] : memref<32x32xf32, #tpu.memory_space<vmem>>, vector<32x32xf32>
    %cst_127 = arith.constant dense<0.000000e+00> : vector<8x32xf32>
    %179 = tpu.matmul %177, %178, %cst_127 {dimension_numbers = #tpu.dot_dimension_numbers<[1], [0], [0], [1], [0, 0, 1, 1], [], []>} : vector<8x32xf32>, vector<32x32xf32>, vector<8x32xf32> -> vector<8x32xf32>
    %c0_128 = arith.constant 0 : index
    %c0_129 = arith.constant 0 : index
    %180 = vector.load %arg13[%c0_128, %c0_129] : memref<1x32xf32, #tpu.memory_space<vmem>>, vector<1x32xf32>
    %181 = vector.broadcast %180 : vector<1x32xf32> to vector<8x32xf32>
    %182 = arith.addf %179, %181 : vector<8x32xf32>
    %c0_130 = arith.constant 0 : index
    %c0_131 = arith.constant 0 : index
    %c0_132 = arith.constant 0 : index
    %183 = vector.load %arg14[%c0_130, %c0_131, %c0_132] : memref<1x8x32xf32, #tpu.memory_space<vmem>>, vector<1x8x32xf32>
    %184 = vector.shape_cast %183 : vector<1x8x32xf32> to vector<8x32xf32>
    %185 = vector.shape_cast %182 : vector<8x32xf32> to vector<1x8x32xf32>
    tpu.vector_store %arg14[%c0_130, %c0_131, %c0_132], %185 {strides = array<i32>} : memref<1x8x32xf32, #tpu.memory_space<vmem>>, vector<1x8x32xf32>,
    return
  }
  func.func @transform_0(%arg0: i32) -> (i32, i32, i32) {
    %c0_i32 = arith.constant 0 : i32
    %c0_i32_0 = arith.constant 0 : i32
    %c0_i32_1 = arith.constant 0 : i32
    return %arg0, %c0_i32, %c0_i32_0 : i32, i32, i32
  }
  func.func @transform_1(%arg0: i32) -> (i32, i32, i32) {
    %c0_i32 = arith.constant 0 : i32
    %c0_i32_0 = arith.constant 0 : i32
    %c0_i32_1 = arith.constant 0 : i32
    return %arg0, %c0_i32, %c0_i32_0 : i32, i32, i32
  }
  func.func @transform_2(%arg0: i32) -> (i32, i32, i32) {
    %c0_i32 = arith.constant 0 : i32
    %c0_i32_0 = arith.constant 0 : i32
    %c0_i32_1 = arith.constant 0 : i32
    return %arg0, %c0_i32, %c0_i32_0 : i32, i32, i32
  }
  func.func @transform_3(%arg0: i32) -> (i32, i32, i32) {
    %c0_i32 = arith.constant 0 : i32
    %c0_i32_0 = arith.constant 0 : i32
    %c0_i32_1 = arith.constant 0 : i32
    %c0_i32_2 = arith.constant 0 : i32
    return %c0_i32, %c0_i32_0, %c0_i32_1 : i32, i32, i32
  }
  func.func @transform_4(%arg0: i32) -> (i32, i32, i32) {
    %c0_i32 = arith.constant 0 : i32
    %c0_i32_0 = arith.constant 0 : i32
    %c0_i32_1 = arith.constant 0 : i32
    %c0_i32_2 = arith.constant 0 : i32
    return %c0_i32, %c0_i32_0, %c0_i32_1 : i32, i32, i32
  }
  func.func @transform_5(%arg0: i32) -> (i32, i32, i32) {
    %c0_i32 = arith.constant 0 : i32
    %c0_i32_0 = arith.constant 0 : i32
    %c0_i32_1 = arith.constant 0 : i32
    %c0_i32_2 = arith.constant 0 : i32
    return %c0_i32, %c0_i32_0, %c0_i32_1 : i32, i32, i32
  }
  func.func @transform_6(%arg0: i32) -> (i32, i32, i32) {
    %c0_i32 = arith.constant 0 : i32
    %c0_i32_0 = arith.constant 0 : i32
    %c0_i32_1 = arith.constant 0 : i32
    %c0_i32_2 = arith.constant 0 : i32
    return %c0_i32, %c0_i32_0, %c0_i32_1 : i32, i32, i32
  }
  func.func @transform_7(%arg0: i32) -> (i32, i32, i32) {
    %c0_i32 = arith.constant 0 : i32
    %c0_i32_0 = arith.constant 0 : i32
    %c0_i32_1 = arith.constant 0 : i32
    %c0_i32_2 = arith.constant 0 : i32
    return %c0_i32, %c0_i32_0, %c0_i32_1 : i32, i32, i32
  }
  func.func @transform_8(%arg0: i32) -> (i32, i32, i32) {
    %c0_i32 = arith.constant 0 : i32
    %c0_i32_0 = arith.constant 0 : i32
    %c0_i32_1 = arith.constant 0 : i32
    %c0_i32_2 = arith.constant 0 : i32
    return %c0_i32, %c0_i32_0, %c0_i32_1 : i32, i32, i32
  }
  func.func @transform_9(%arg0: i32) -> (i32, i32) {
    %c0_i32 = arith.constant 0 : i32
    %c0_i32_0 = arith.constant 0 : i32
    %c0_i32_1 = arith.constant 0 : i32
    return %c0_i32, %c0_i32_0 : i32, i32
  }
  func.func @transform_10(%arg0: i32) -> (i32, i32) {
    %c0_i32 = arith.constant 0 : i32
    %c0_i32_0 = arith.constant 0 : i32
    %c0_i32_1 = arith.constant 0 : i32
    return %c0_i32, %c0_i32_0 : i32, i32
  }
  func.func @transform_11(%arg0: i32) -> (i32, i32) {
    %c0_i32 = arith.constant 0 : i32
    %c0_i32_0 = arith.constant 0 : i32
    %c0_i32_1 = arith.constant 0 : i32
    return %c0_i32, %c0_i32_0 : i32, i32
  }
  func.func @transform_12(%arg0: i32) -> (i32, i32) {
    %c0_i32 = arith.constant 0 : i32
    %c0_i32_0 = arith.constant 0 : i32
    %c0_i32_1 = arith.constant 0 : i32
    return %c0_i32, %c0_i32_0 : i32, i32
  }
  func.func @transform_13(%arg0: i32) -> (i32, i32, i32) {
    %c0_i32 = arith.constant 0 : i32
    %c0_i32_0 = arith.constant 0 : i32
    %c0_i32_1 = arith.constant 0 : i32
    return %arg0, %c0_i32, %c0_i32_0 : i32, i32, i32
  }
}

</mosaic_0001>

<llo_original>
// kernel: tpu_custom_call.1
$region0: #{tpu_custom_call.1}
  #allocation0 [shape = 'u32[]', space=smem, size = 0x4, offset = 0x4, fixed_abs, tag = 'smem constant byte address 0x4 - core index']
  #allocation1 [shape = 'u32[144,128]{1,0:T(1,128)}', space=vmem, size = 0x12000, scoped, tag = 'internal scratch']
  #allocation2 [shape = 'f32[1,1]{1,0:T(1,128)S(1)}', space=vmem, size = 0x200, scoped, tag = 'scoped memory for tpu_custom_call.1']
  %s0 = inlined_call_operand.vmem [shape: f32[2,8,32], index: 0, kind: input, shape index: {}]
  %s1 = inlined_call_operand.vmem [shape: f32[2,8,32], index: 1, kind: input, shape index: {}]
  %s2 = inlined_call_operand.vmem [shape: f32[2,8,32], index: 2, kind: input, shape index: {}]
  %s3 = inlined_call_operand.vmem [shape: f32[4,32,8], index: 3, kind: input, shape index: {}]
  %s4 = inlined_call_operand.vmem [shape: f32[4,1,8], index: 4, kind: input, shape index: {}]
  %s5 = inlined_call_operand.vmem [shape: f32[4,32,8], index: 5, kind: input, shape index: {}]
  %s6 = inlined_call_operand.vmem [shape: f32[4,1,8], index: 6, kind: input, shape index: {}]
  %s7 = inlined_call_operand.vmem [shape: f32[4,32,8], index: 7, kind: input, shape index: {}]
  %s8 = inlined_call_operand.vmem [shape: f32[4,1,8], index: 8, kind: input, shape index: {}]
  %s9 = inlined_call_operand.vmem [shape: f32[1,8], index: 9, kind: input, shape index: {}]
  %s10 = inlined_call_operand.<no memory space> [shape: f32[1,1], index: 10, kind: input, shape index: {}]
  %s11 = inlined_call_operand.vmem [shape: f32[32,32], index: 11, kind: input, shape index: {}]
  %s12 = inlined_call_operand.vmem [shape: f32[1,32], index: 12, kind: input, shape index: {}]
  %s13 = inlined_call_operand.hbm [shape: f32[2,8,32], index: 13, kind: output, shape index: {}]
  %s14 = sld [smem:[#allocation0]]
  $region85: #{tpu_custom_call.1} parent=0
    _
  %s16 = ssub.s32 1, %s14
  %s17 = scalar_select 0, %s16, %s14
  %v18 = vstv %s10
  %19 = vst [vmem:[#allocation2] sm:$0x1] %v18
  $region1: #{tpu_custom_call.1} parent=0
    #allocation3 [shape = 'u8[8192]{0}', space=vmem, size = 0x2000, scoped, tag = 'output window, operand 0']
    #allocation4 [shape = 's32[2]{0}', space=sflag, size = 0x8, scoped, tag = 'scoped memory for tpu_custom_call.1']
    %20 = vsyncpa [#allocation4], 0
    %s21 = scalar_lea.sflag [#allocation4], 1
    %22 = vsyncpa %s21, 0
    loop: start=0, step=1, limit=4
    $region2: #{tpu_custom_call.1} parent=1 // loop_pre_header
      _
    $region3: #{tpu_custom_call.1} parent=1 // loop_header
      %s24 = sphi 0, %s28
      %p25 = scmp.ge.s32.totalorder %s24, 4
      %s34 = sphi 0, %s36
      %s37 = sphi 0, %s34
      %s38 = sphi 0, %s37
      %s54 = sphi 0, %s38
      %s60 = sphi 0, %s62
      %s63 = sphi 0, %s60
      %s64 = sphi 0, %s63
      %s80 = sphi 0, %s64
      %s86 = sphi 0, %s88
      %s89 = sphi 0, %s86
      %s90 = sphi 0, %s89
      %s106 = sphi 0, %s90
      %s110 = sphi 0, %s110
      %s112 = sphi 0, %s110
      %s113 = sphi 0, %s112
      %s127 = sphi 0, %s113
      %s131 = sphi 0, %s131
      %s133 = sphi 0, %s131
      %s134 = sphi 0, %s133
      %s148 = sphi 0, %s134
      %s152 = sphi 0, %s152
      %s154 = sphi 0, %s152
      %s155 = sphi 0, %s154
      %s169 = sphi 0, %s155
      %s173 = sphi 0, %s173
      %s175 = sphi 0, %s173
      %s176 = sphi 0, %s175
      %s190 = sphi 0, %s176
      %s194 = sphi 0, %s194
      %s196 = sphi 0, %s194
      %s197 = sphi 0, %s196
      %s211 = sphi 0, %s197
      %s215 = sphi 0, %s215
      %s217 = sphi 0, %s215
      %s218 = sphi 0, %s217
      %s232 = sphi 0, %s218
      %s236 = sphi 0, %s236
      %s238 = sphi 0, %s236
      %s239 = sphi 0, %s238
      %s253 = sphi 0, %s239
      %s257 = sphi 0, %s257
      %s259 = sphi 0, %s257
      %s260 = sphi 0, %s259
      %s274 = sphi 0, %s260
      %s278 = sphi 0, %s278
      %s280 = sphi 0, %s278
      %s281 = sphi 0, %s280
      %s295 = sphi 0, %s281
      %s299 = sphi 0, %s299
      %s301 = sphi 0, %s299
      %s302 = sphi 0, %s301
      %s316 = sphi 0, %s302
      %s322 = sphi 0, %s324
      %s325 = sphi 0, %s322
      %s326 = sphi 0, %s325
      %s342 = sphi 0, %s326
    $region4: #{tpu_custom_call.1} parent=1 // loop_header_branch
      %27 = sbr.rel (%p25) target = $region8
    $region5: #{tpu_custom_call.1} parent=1 // loop_body
      %s29 = ssub.s32 %s24, 1
      %s30 = ssub.s32 %s24, 2
      %s31 = sadd.s32 %s24, 1
      %s32 = ssub.s32 %s24, %s31
      %p33 = scmp.eq.s32.totalorder %s32, 0
      %s35 = sadd.s32 %s34, 1
      %s36 = scalar_select %p33, %s34, %s35
      %p39 = pneg %p33
      %p40 = scmp.eq.s32.totalorder %s24, 1
      %p41 = por %p39, %p40
      %p42 = scmp.ne.s32.totalorder %s34, %s37
      %p43 = scmp.eq.s32.totalorder %s24, 0
      %p44 = por %p42, %p43
      %p45 = scmp.ne.s32.totalorder %s34, %s37
      %p46 = scmp.eq.s32.totalorder %s29, 1
      %p47 = por %p45, %p46
      %p48 = scmp.ne.s32.totalorder %s37, %s38
      %p49 = scmp.eq.s32.totalorder %s29, 0
      %p50 = por %p48, %p49
      %p51 = scmp.ne.s32.totalorder %s37, %s38
      %p52 = scmp.eq.s32.totalorder %s30, 1
      %p53 = por %p51, %p52
      %p55 = scmp.ne.s32.totalorder %s38, %s54
      %p56 = scmp.eq.s32.totalorder %s30, 0
      %p57 = por %p55, %p56
      %s58 = ssub.s32 %s24, %s31
      %p59 = scmp.eq.s32.totalorder %s58, 0
      %s61 = sadd.s32 %s60, 1
      %s62 = scalar_select %p59, %s60, %s61
      %p65 = pneg %p59
      %p66 = scmp.eq.s32.totalorder %s24, 1
      %p67 = por %p65, %p66
      %p68 = scmp.ne.s32.totalorder %s60, %s63
      %p69 = scmp.eq.s32.totalorder %s24, 0
      %p70 = por %p68, %p69
      %p71 = scmp.ne.s32.totalorder %s60, %s63
      %p72 = scmp.eq.s32.totalorder %s29, 1
      %p73 = por %p71, %p72
      %p74 = scmp.ne.s32.totalorder %s63, %s64
      %p75 = scmp.eq.s32.totalorder %s29, 0
      %p76 = por %p74, %p75
      %p77 = scmp.ne.s32.totalorder %s63, %s64
      %p78 = scmp.eq.s32.totalorder %s30, 1
      %p79 = por %p77, %p78
      %p81 = scmp.ne.s32.totalorder %s64, %s80
      %p82 = scmp.eq.s32.totalorder %s30, 0
      %p83 = por %p81, %p82
      %s84 = ssub.s32 %s24, %s31
      %p85 = scmp.eq.s32.totalorder %s84, 0
      %s87 = sadd.s32 %s86, 1
      %s88 = scalar_select %p85, %s86, %s87
      %p91 = pneg %p85
      %p92 = scmp.eq.s32.totalorder %s24, 1
      %p93 = por %p91, %p92
      %p94 = scmp.ne.s32.totalorder %s86, %s89
      %p95 = scmp.eq.s32.totalorder %s24, 0
      %p96 = por %p94, %p95
      %p97 = scmp.ne.s32.totalorder %s86, %s89
      %p98 = scmp.eq.s32.totalorder %s29, 1
      %p99 = por %p97, %p98
      %p100 = scmp.ne.s32.totalorder %s89, %s90
      %p101 = scmp.eq.s32.totalorder %s29, 0
      %p102 = por %p100, %p101
      %p103 = scmp.ne.s32.totalorder %s89, %s90
      %p104 = scmp.eq.s32.totalorder %s30, 1
      %p105 = por %p103, %p104
      %p107 = scmp.ne.s32.totalorder %s90, %s106
      %p108 = scmp.eq.s32.totalorder %s30, 0
      %p109 = por %p107, %p108
      %s111 = sadd.s32 %s110, 1
      %p114 = scmp.eq.s32.totalorder %s24, 1
      %p115 = scmp.ne.s32.totalorder %s110, %s112
      %p116 = scmp.eq.s32.totalorder %s24, 0
      %p117 = por %p115, %p116
      %p118 = scmp.ne.s32.totalorder %s110, %s112
      %p119 = scmp.eq.s32.totalorder %s29, 1
      %p120 = por %p118, %p119
      %p121 = scmp.ne.s32.totalorder %s112, %s113
      %p122 = scmp.eq.s32.totalorder %s29, 0
      %p123 = por %p121, %p122
      %p124 = scmp.ne.s32.totalorder %s112, %s113
      %p125 = scmp.eq.s32.totalorder %s30, 1
      %p126 = por %p124, %p125
      %p128 = scmp.ne.s32.totalorder %s113, %s127
      %p129 = scmp.eq.s32.totalorder %s30, 0
      %p130 = por %p128, %p129
      %s132 = sadd.s32 %s131, 1
      %p135 = scmp.eq.s32.totalorder %s24, 1
      %p136 = scmp.ne.s32.totalorder %s131, %s133
      %p137 = scmp.eq.s32.totalorder %s24, 0
      %p138 = por %p136, %p137
      %p139 = scmp.ne.s32.totalorder %s131, %s133
      %p140 = scmp.eq.s32.totalorder %s29, 1
      %p141 = por %p139, %p140
      %p142 = scmp.ne.s32.totalorder %s133, %s134
      %p143 = scmp.eq.s32.totalorder %s29, 0
      %p144 = por %p142, %p143
      %p145 = scmp.ne.s32.totalorder %s133, %s134
      %p146 = scmp.eq.s32.totalorder %s30, 1
      %p147 = por %p145, %p146
      %p149 = scmp.ne.s32.totalorder %s134, %s148
      %p150 = scmp.eq.s32.totalorder %s30, 0
      %p151 = por %p149, %p150
      %s153 = sadd.s32 %s152, 1
      %p156 = scmp.eq.s32.totalorder %s24, 1
      %p157 = scmp.ne.s32.totalorder %s152, %s154
      %p158 = scmp.eq.s32.totalorder %s24, 0
      %p159 = por %p157, %p158
      %p160 = scmp.ne.s32.totalorder %s152, %s154
      %p161 = scmp.eq.s32.totalorder %s29, 1
      %p162 = por %p160, %p161
      %p163 = scmp.ne.s32.totalorder %s154, %s155
      %p164 = scmp.eq.s32.totalorder %s29, 0
      %p165 = por %p163, %p164
      %p166 = scmp.ne.s32.totalorder %s154, %s155
      %p167 = scmp.eq.s32.totalorder %s30, 1
      %p168 = por %p166, %p167
      %p170 = scmp.ne.s32.totalorder %s155, %s169
      %p171 = scmp.eq.s32.totalorder %s30, 0
      %p172 = por %p170, %p171
      %s174 = sadd.s32 %s173, 1
      %p177 = scmp.eq.s32.totalorder %s24, 1
      %p178 = scmp.ne.s32.totalorder %s173, %s175
      %p179 = scmp.eq.s32.totalorder %s24, 0
      %p180 = por %p178, %p179
      %p181 = scmp.ne.s32.totalorder %s173, %s175
      %p182 = scmp.eq.s32.totalorder %s29, 1
      %p183 = por %p181, %p182
      %p184 = scmp.ne.s32.totalorder %s175, %s176
      %p185 = scmp.eq.s32.totalorder %s29, 0
      %p186 = por %p184, %p185
      %p187 = scmp.ne.s32.totalorder %s175, %s176
      %p188 = scmp.eq.s32.totalorder %s30, 1
      %p189 = por %p187, %p188
      %p191 = scmp.ne.s32.totalorder %s176, %s190
      %p192 = scmp.eq.s32.totalorder %s30, 0
      %p193 = por %p191, %p192
      %s195 = sadd.s32 %s194, 1
      %p198 = scmp.eq.s32.totalorder %s24, 1
      %p199 = scmp.ne.s32.totalorder %s194, %s196
      %p200 = scmp.eq.s32.totalorder %s24, 0
      %p201 = por %p199, %p200
      %p202 = scmp.ne.s32.totalorder %s194, %s196
      %p203 = scmp.eq.s32.totalorder %s29, 1
      %p204 = por %p202, %p203
      %p205 = scmp.ne.s32.totalorder %s196, %s197
      %p206 = scmp.eq.s32.totalorder %s29, 0
      %p207 = por %p205, %p206
      %p208 = scmp.ne.s32.totalorder %s196, %s197
      %p209 = scmp.eq.s32.totalorder %s30, 1
      %p210 = por %p208, %p209
      %p212 = scmp.ne.s32.totalorder %s197, %s211
      %p213 = scmp.eq.s32.totalorder %s30, 0
      %p214 = por %p212, %p213
      %s216 = sadd.s32 %s215, 1
      %p219 = scmp.eq.s32.totalorder %s24, 1
      %p220 = scmp.ne.s32.totalorder %s215, %s217
      %p221 = scmp.eq.s32.totalorder %s24, 0
      %p222 = por %p220, %p221
      %p223 = scmp.ne.s32.totalorder %s215, %s217
      %p224 = scmp.eq.s32.totalorder %s29, 1
      %p225 = por %p223, %p224
      %p226 = scmp.ne.s32.totalorder %s217, %s218
      %p227 = scmp.eq.s32.totalorder %s29, 0
      %p228 = por %p226, %p227
      %p229 = scmp.ne.s32.totalorder %s217, %s218
      %p230 = scmp.eq.s32.totalorder %s30, 1
      %p231 = por %p229, %p230
      %p233 = scmp.ne.s32.totalorder %s218, %s232
      %p234 = scmp.eq.s32.totalorder %s30, 0
      %p235 = por %p233, %p234
      %s237 = sadd.s32 %s236, 1
      %p240 = scmp.eq.s32.totalorder %s24, 1
      %p241 = scmp.ne.s32.totalorder %s236, %s238
      %p242 = scmp.eq.s32.totalorder %s24, 0
      %p243 = por %p241, %p242
      %p244 = scmp.ne.s32.totalorder %s236, %s238
      %p245 = scmp.eq.s32.totalorder %s29, 1
      %p246 = por %p244, %p245
      %p247 = scmp.ne.s32.totalorder %s238, %s239
      %p248 = scmp.eq.s32.totalorder %s29, 0
      %p249 = por %p247, %p248
      %p250 = scmp.ne.s32.totalorder %s238, %s239
      %p251 = scmp.eq.s32.totalorder %s30, 1
      %p252 = por %p250, %p251
      %p254 = scmp.ne.s32.totalorder %s239, %s253
      %p255 = scmp.eq.s32.totalorder %s30, 0
      %p256 = por %p254, %p255
      %s258 = sadd.s32 %s257, 1
      %p261 = scmp.eq.s32.totalorder %s24, 1
      %p262 = scmp.ne.s32.totalorder %s257, %s259
      %p263 = scmp.eq.s32.totalorder %s24, 0
      %p264 = por %p262, %p263
      %p265 = scmp.ne.s32.totalorder %s257, %s259
      %p266 = scmp.eq.s32.totalorder %s29, 1
      %p267 = por %p265, %p266
      %p268 = scmp.ne.s32.totalorder %s259, %s260
      %p269 = scmp.eq.s32.totalorder %s29, 0
      %p270 = por %p268, %p269
      %p271 = scmp.ne.s32.totalorder %s259, %s260
      %p272 = scmp.eq.s32.totalorder %s30, 1
      %p273 = por %p271, %p272
      %p275 = scmp.ne.s32.totalorder %s260, %s274
      %p276 = scmp.eq.s32.totalorder %s30, 0
      %p277 = por %p275, %p276
      %s279 = sadd.s32 %s278, 1
      %p282 = scmp.eq.s32.totalorder %s24, 1
      %p283 = scmp.ne.s32.totalorder %s278, %s280
      %p284 = scmp.eq.s32.totalorder %s24, 0
      %p285 = por %p283, %p284
      %p286 = scmp.ne.s32.totalorder %s278, %s280
      %p287 = scmp.eq.s32.totalorder %s29, 1
      %p288 = por %p286, %p287
      %p289 = scmp.ne.s32.totalorder %s280, %s281
      %p290 = scmp.eq.s32.totalorder %s29, 0
      %p291 = por %p289, %p290
      %p292 = scmp.ne.s32.totalorder %s280, %s281
      %p293 = scmp.eq.s32.totalorder %s30, 1
      %p294 = por %p292, %p293
      %p296 = scmp.ne.s32.totalorder %s281, %s295
      %p297 = scmp.eq.s32.totalorder %s30, 0
      %p298 = por %p296, %p297
      %s300 = sadd.s32 %s299, 1
      %p303 = scmp.eq.s32.totalorder %s24, 1
      %p304 = scmp.ne.s32.totalorder %s299, %s301
      %p305 = scmp.eq.s32.totalorder %s24, 0
      %p306 = por %p304, %p305
      %p307 = scmp.ne.s32.totalorder %s299, %s301
      %p308 = scmp.eq.s32.totalorder %s29, 1
      %p309 = por %p307, %p308
      %p310 = scmp.ne.s32.totalorder %s301, %s302
      %p311 = scmp.eq.s32.totalorder %s29, 0
      %p312 = por %p310, %p311
      %p313 = scmp.ne.s32.totalorder %s301, %s302
      %p314 = scmp.eq.s32.totalorder %s30, 1
      %p315 = por %p313, %p314
      %p317 = scmp.ne.s32.totalorder %s302, %s316
      %p318 = scmp.eq.s32.totalorder %s30, 0
      %p319 = por %p317, %p318
      %s320 = ssub.s32 %s24, %s31
      %p321 = scmp.eq.s32.totalorder %s320, 0
      %s323 = sadd.s32 %s322, 1
      %s324 = scalar_select %p321, %s322, %s323
      %p327 = pneg %p321
      %p328 = scmp.eq.s32.totalorder %s24, 1
      %p329 = por %p327, %p328
      %p330 = scmp.ne.s32.totalorder %s322, %s325
      %p331 = scmp.eq.s32.totalorder %s24, 0
      %p332 = por %p330, %p331
      %p333 = scmp.ne.s32.totalorder %s322, %s325
      %p334 = scmp.eq.s32.totalorder %s29, 1
      %p335 = por %p333, %p334
      %p336 = scmp.ne.s32.totalorder %s325, %s326
      %p337 = scmp.eq.s32.totalorder %s29, 0
      %p338 = por %p336, %p337
      %p339 = scmp.ne.s32.totalorder %s325, %s326
      %p340 = scmp.eq.s32.totalorder %s30, 1
      %p341 = por %p339, %p340
      %p343 = scmp.ne.s32.totalorder %s326, %s342
      %p344 = scmp.eq.s32.totalorder %s30, 0
      %p345 = por %p343, %p344
      %p346 = scmp.le.s32.totalorder 1, %s24
      %p347 = scmp.lt.s32.totalorder %s24, 3
      %p348 = pnand %p346, %p347
      %p349 = pneg %p348
      // Predicated region
      $region9: #{tpu_custom_call.1} parent=5 // pred_check
        _
      $region10: #{tpu_custom_call.1} parent=5 // pred_check_branch
        %351 = sbr.rel (%p348) target = $region12
      $region11: #{tpu_custom_call.1} parent=5 // pred_region
        %s352 = ssub.s32 %s24, 1
        // Predicated region
        $region13: #{tpu_custom_call.1} parent=11 // pred_check
          %p353 = pneg %p123
        $region14: #{tpu_custom_call.1} parent=11 // pred_check_branch
          %355 = sbr.rel (%p353) target = $region16
        $region15: #{tpu_custom_call.1} parent=11 // pred_region
          _
        $region16: #{tpu_custom_call.1} parent=11 // pred_fallthru
          _
        // Predicated region
        $region17: #{tpu_custom_call.1} parent=11 // pred_check
          %p356 = pneg %p144
        $region18: #{tpu_custom_call.1} parent=11 // pred_check_branch
          %358 = sbr.rel (%p356) target = $region20
        $region19: #{tpu_custom_call.1} parent=11 // pred_region
          _
        $region20: #{tpu_custom_call.1} parent=11 // pred_fallthru
          _
        // Predicated region
        $region21: #{tpu_custom_call.1} parent=11 // pred_check
          %p359 = pneg %p165
        $region22: #{tpu_custom_call.1} parent=11 // pred_check_branch
          %361 = sbr.rel (%p359) target = $region24
        $region23: #{tpu_custom_call.1} parent=11 // pred_region
          _
        $region24: #{tpu_custom_call.1} parent=11 // pred_fallthru
          _
        // Predicated region
        $region25: #{tpu_custom_call.1} parent=11 // pred_check
          %p362 = pneg %p186
        $region26: #{tpu_custom_call.1} parent=11 // pred_check_branch
          %364 = sbr.rel (%p362) target = $region28
        $region27: #{tpu_custom_call.1} parent=11 // pred_region
          _
        $region28: #{tpu_custom_call.1} parent=11 // pred_fallthru
          _
        // Predicated region
        $region29: #{tpu_custom_call.1} parent=11 // pred_check
          %p365 = pneg %p207
        $region30: #{tpu_custom_call.1} parent=11 // pred_check_branch
          %367 = sbr.rel (%p365) target = $region32
        $region31: #{tpu_custom_call.1} parent=11 // pred_region
          _
        $region32: #{tpu_custom_call.1} parent=11 // pred_fallthru
          _
        // Predicated region
        $region33: #{tpu_custom_call.1} parent=11 // pred_check
          %p368 = pneg %p228
        $region34: #{tpu_custom_call.1} parent=11 // pred_check_branch
          %370 = sbr.rel (%p368) target = $region36
        $region35: #{tpu_custom_call.1} parent=11 // pred_region
          _
        $region36: #{tpu_custom_call.1} parent=11 // pred_fallthru
          _
        // Predicated region
        $region37: #{tpu_custom_call.1} parent=11 // pred_check
          %p371 = pneg %p249
        $region38: #{tpu_custom_call.1} parent=11 // pred_check_branch
          %373 = sbr.rel (%p371) target = $region40
        $region39: #{tpu_custom_call.1} parent=11 // pred_region
          _
        $region40: #{tpu_custom_call.1} parent=11 // pred_fallthru
          _
        // Predicated region
        $region41: #{tpu_custom_call.1} parent=11 // pred_check
          %p374 = pneg %p270
        $region42: #{tpu_custom_call.1} parent=11 // pred_check_branch
          %376 = sbr.rel (%p374) target = $region44
        $region43: #{tpu_custom_call.1} parent=11 // pred_region
          _
        $region44: #{tpu_custom_call.1} parent=11 // pred_fallthru
          _
        // Predicated region
        $region45: #{tpu_custom_call.1} parent=11 // pred_check
          %p377 = pneg %p291
        $region46: #{tpu_custom_call.1} parent=11 // pred_check_branch
          %379 = sbr.rel (%p377) target = $region48
        $region47: #{tpu_custom_call.1} parent=11 // pred_region
          _
        $region48: #{tpu_custom_call.1} parent=11 // pred_fallthru
          _
        // Predicated region
        $region49: #{tpu_custom_call.1} parent=11 // pred_check
          %p380 = pneg %p312
        $region50: #{tpu_custom_call.1} parent=11 // pred_check_branch
          %382 = sbr.rel (%p380) target = $region52
        $region51: #{tpu_custom_call.1} parent=11 // pred_region
          _
        $region52: #{tpu_custom_call.1} parent=11 // pred_fallthru
          _
      $region12: #{tpu_custom_call.1} parent=5 // pred_fallthru
        _
      %p383 = scmp.lt.s32.totalorder %s24, 2
      // Predicated region
      $region53: #{tpu_custom_call.1} parent=5 // pred_check
        %p384 = pneg %p383
      $region54: #{tpu_custom_call.1} parent=5 // pred_check_branch
        %386 = sbr.rel (%p384) target = $region56
      $region55: #{tpu_custom_call.1} parent=5 // pred_region
        // Predicated region
        $region57: #{tpu_custom_call.1} parent=55 // pred_check
          %p387 = pneg %p44
        $region58: #{tpu_custom_call.1} parent=55 // pred_check_branch
          %389 = sbr.rel (%p387) target = $region60
        $region59: #{tpu_custom_call.1} parent=55 // pred_region
          %p390 = scmp.lt.s32.totalorder %s24, 1
          %s391 = scalar_select %p390, %s24, 1
          %s392 = smul.addr %s391, 8
          %s393 = scalar_lea.vmem %s0, %s392
        $region60: #{tpu_custom_call.1} parent=55 // pred_fallthru
          _
        // Predicated region
        $region61: #{tpu_custom_call.1} parent=55 // pred_check
          %p394 = pneg %p70
        $region62: #{tpu_custom_call.1} parent=55 // pred_check_branch
          %396 = sbr.rel (%p394) target = $region64
        $region63: #{tpu_custom_call.1} parent=55 // pred_region
          %p397 = scmp.lt.s32.totalorder %s24, 1
          %s398 = scalar_select %p397, %s24, 1
          %s399 = smul.addr %s398, 8
          %s400 = scalar_lea.vmem %s1, %s399
        $region64: #{tpu_custom_call.1} parent=55 // pred_fallthru
          _
        // Predicated region
        $region65: #{tpu_custom_call.1} parent=55 // pred_check
          %p401 = pneg %p96
        $region66: #{tpu_custom_call.1} parent=55 // pred_check_branch
          %403 = sbr.rel (%p401) target = $region68
        $region67: #{tpu_custom_call.1} parent=55 // pred_region
          %p404 = scmp.lt.s32.totalorder %s24, 1
          %s405 = scalar_select %p404, %s24, 1
          %s406 = smul.addr %s405, 8
          %s407 = scalar_lea.vmem %s2, %s406
        $region68: #{tpu_custom_call.1} parent=55 // pred_fallthru
          _
      $region56: #{tpu_custom_call.1} parent=5 // pred_fallthru
        _
      %p408 = scmp.le.s32.totalorder 1, %s24
      %p409 = scmp.lt.s32.totalorder %s24, 3
      %p410 = pnand %p408, %p409
      %p411 = pneg %p410
      // Predicated region
      $region69: #{tpu_custom_call.1} parent=5 // pred_check
        _
      $region70: #{tpu_custom_call.1} parent=5 // pred_check_branch
        %413 = sbr.rel (%p410) target = $region72
      $region71: #{tpu_custom_call.1} parent=5 // pred_region
        %s414 = ssub.s32 %s24, 1
        %p415 = scmp.lt.s32.totalorder %s29, 1
        %s416 = scalar_select %p415, %s29, 1
        %s417 = smul.addr %s416, 8
        %s418 = scalar_lea.vmem %s0, %s417
        %p419 = pneg %p50
        %p420 = pneg %p47
        %p421 = scmp.lt.s32.totalorder %s29, 1
        %s422 = scalar_select %p421, %s29, 1
        %s423 = smul.addr %s422, 8
        %s424 = scalar_lea.vmem %s1, %s423
        %p425 = pneg %p76
        %p426 = pneg %p73
        %p427 = scmp.lt.s32.totalorder %s29, 1
        %s428 = scalar_select %p427, %s29, 1
        %s429 = smul.addr %s428, 8
        %s430 = scalar_lea.vmem %s2, %s429
        %p431 = pneg %p102
        %p432 = pneg %p99
        %p433 = pneg %p123
        %p434 = pneg %p120
        %p435 = pneg %p144
        %p436 = pneg %p141
        %p437 = pneg %p165
        %p438 = pneg %p162
        %p439 = pneg %p186
        %p440 = pneg %p183
        %p441 = pneg %p207
        %p442 = pneg %p204
        %p443 = pneg %p228
        %p444 = pneg %p225
        %p445 = pneg %p249
        %p446 = pneg %p246
        %p447 = pneg %p270
        %p448 = pneg %p267
        %p449 = pneg %p291
        %p450 = pneg %p288
        %p451 = pneg %p312
        %p452 = pneg %p309
        %p453 = pneg %p338
        %p454 = pneg %p335
        %s455 = sand.u32 %s325, 1
        %s456 = scalar_lea.sflag [#allocation4], %s455
        %s457 = sand.u32 %s325, 1
        %s458 = smul.addr %s457, 8
        %s459 = scalar_lea.vmem [#allocation3], %s458
        %p460 = scmp.lt.s32.totalorder %s29, 1
        %s461 = scalar_select %p460, %s29, 1
        %s462 = smul.addr %s461, 8
        %s463 = scalar_lea.vmem %s0, %s462
        %p464 = scmp.lt.s32.totalorder %s29, 1
        %s465 = scalar_select %p464, %s29, 1
        %s466 = smul.addr %s465, 8
        %s467 = scalar_lea.vmem %s1, %s466
        %p468 = scmp.lt.s32.totalorder %s29, 1
        %s469 = scalar_select %p468, %s29, 1
        %s470 = smul.addr %s469, 8
        %s471 = scalar_lea.vmem %s2, %s470
        %v472 = vld [vmem:[%s463] sm:$0xff]
        %v473 = vld [vmem:[%s467] sm:$0xff]
        %v474 = vld [vmem:[%s471] sm:$0xff]
        %v475 = vld [vmem:[%s3] sm:$0xff]
        %v476 = vld [vmem:[%s3 + $0x8] sm:$0xff]
        %v477 = vld [vmem:[%s3 + $0x10] sm:$0xff]
        %v478 = vld [vmem:[%s3 + $0x18] sm:$0xff]
        %v479 = vld [vmem:[%s4] sm:$0x1]
        %v481 = vlaneseq
        %v482 = vshrl.u32 %v481, 7
        %v483 = vsub.s32 0, %v482
        %v484 = vrot.slane %v479, %v483
        %vm486 = vcmask 261120
        %v488 = vsel %vm486, %v472, 0
        %490 = vmatprep.subr.mxu0 0.0
        %491 = vmatpush1.msra.mxu0 0.0
        %492 = vmatprep.subr.mxu0 0.0
        %493 = vmatpush1.msra.mxu0 0.0
        %494 = vmatprep.subr.mxu0 0.0
        %495 = vmatpush1.msra.mxu0 0.0
        %496 = vmatprep.subr.mxu0 0.0
        %497 = vmatpush1.msra.mxu0 0.0
        %498 = vmatprep.subr.mxu0 0.0
        %499 = vmatpush1.msra.mxu0 0.0
        %500 = vmatprep.subr.mxu0 0.0
        %501 = vmatpush1.msra.mxu0 0.0
        %502 = vmatprep.subr.mxu0 0.0
        %503 = vmatpush1.msra.mxu0 0.0
        %504 = vmatprep.subr.mxu0 0.0
        %505 = vmatpush1.msra.mxu0 0.0
        %506 = vmatprep.subr.mxu0 0.0
        %507 = vmatpush1.msra.mxu0 0.0
        %508 = vmatprep.subr.mxu0 0.0
        %509 = vmatpush1.msra.mxu0 0.0
        %510 = vmatprep.subr.mxu0 0.0
        %511 = vmatpush1.msra.mxu0 0.0
        %512 = vmatprep.subr.mxu0 0.0
        %513 = vmatpush1.msra.mxu0 0.0
        %514 = vmatprep.subr.mxu0 0.0
        %515 = vmatpush1.msra.mxu0 %v478
        %516 = vmatprep.subr.mxu0 0.0
        %517 = vmatpush1.msra.mxu0 %v477
        %518 = vmatprep.subr.mxu0 0.0
        %519 = vmatpush1.msra.mxu0 %v476
        %520 = vmatprep.subr.mxu0 0.0
        %521 = vmatpush1.msra.mxu0 %v475
        %522 = vmatprep.subr.mxu0 0.0
        %523 = vmatpush2.msra.mxu0 0.0
        %524 = vmatprep.subr.mxu0 0.0
        %525 = vmatpush2.msra.mxu0 0.0
        %526 = vmatprep.subr.mxu0 0.0
        %527 = vmatpush2.msra.mxu0 0.0
        %528 = vmatprep.subr.mxu0 0.0
        %529 = vmatpush2.msra.mxu0 0.0
        %530 = vmatprep.subr.mxu0 0.0
        %531 = vmatpush2.msra.mxu0 0.0
        %532 = vmatprep.subr.mxu0 0.0
        %533 = vmatpush2.msra.mxu0 0.0
        %534 = vmatprep.subr.mxu0 0.0
        %535 = vmatpush2.msra.mxu0 0.0
        %536 = vmatprep.subr.mxu0 0.0
        %537 = vmatpush2.msra.mxu0 0.0
        %538 = vmatprep.subr.mxu0 0.0
        %539 = vmatpush2.msra.mxu0 0.0
        %540 = vmatprep.subr.mxu0 0.0
        %541 = vmatpush2.msra.mxu0 0.0
        %542 = vmatprep.subr.mxu0 0.0
        %543 = vmatpush2.msra.mxu0 0.0
        %544 = vmatprep.subr.mxu0 0.0
        %545 = vmatpush2.msra.mxu0 0.0
        %546 = vmatprep.subr.mxu0 0.0
        %547 = vmatpush2.msra.mxu0 0.0
        %548 = vmatprep.subr.mxu0 0.0
        %549 = vmatpush2.msra.mxu0 0.0
        %550 = vmatprep.subr.mxu0 0.0
        %551 = vmatpush2.msra.mxu0 0.0
        %552 = vmatprep.subr.mxu0 0.0
        %553 = vmatpush2.msra.mxu0 0.0
        %554 = vmatprep.mubr.f32.mxu0 0.0
        %555 = vmatmul.mubr.f32.gmra.mxu0 %v488
        %v556 = vpop.f32.mrf.mxu0
        %v557 = vadd.f32 %v484, %v556
        %v558 = vpop.f32.mrf.mxu0
        %559 = vdwg.mxu0
        %v560 = vld [vmem:[%s5] sm:$0xff]
        %v561 = vld [vmem:[%s5 + $0x8] sm:$0xff]
        %v562 = vld [vmem:[%s5 + $0x10] sm:$0xff]
        %v563 = vld [vmem:[%s5 + $0x18] sm:$0xff]
        %v564 = vld [vmem:[%s6] sm:$0x1]
        %v566 = vlaneseq
        %v567 = vshrl.u32 %v566, 7
        %v568 = vsub.s32 0, %v567
        %v569 = vrot.slane %v564, %v568
        %v572 = vsel %vm486, %v473, 0
        %574 = vmatprep.subr.mxu0 0.0
        %575 = vmatpush1.msra.mxu0 0.0
        %576 = vmatprep.subr.mxu0 0.0
        %577 = vmatpush1.msra.mxu0 0.0
        %578 = vmatprep.subr.mxu0 0.0
        %579 = vmatpush1.msra.mxu0 0.0
        %580 = vmatprep.subr.mxu0 0.0
        %581 = vmatpush1.msra.mxu0 0.0
        %582 = vmatprep.subr.mxu0 0.0
        %583 = vmatpush1.msra.mxu0 0.0
        %584 = vmatprep.subr.mxu0 0.0
        %585 = vmatpush1.msra.mxu0 0.0
        %586 = vmatprep.subr.mxu0 0.0
        %587 = vmatpush1.msra.mxu0 0.0
        %588 = vmatprep.subr.mxu0 0.0
        %589 = vmatpush1.msra.mxu0 0.0
        %590 = vmatprep.subr.mxu0 0.0
        %591 = vmatpush1.msra.mxu0 0.0
        %592 = vmatprep.subr.mxu0 0.0
        %593 = vmatpush1.msra.mxu0 0.0
        %594 = vmatprep.subr.mxu0 0.0
        %595 = vmatpush1.msra.mxu0 0.0
        %596 = vmatprep.subr.mxu0 0.0
        %597 = vmatpush1.msra.mxu0 0.0
        %598 = vmatprep.subr.mxu0 0.0
        %599 = vmatpush1.msra.mxu0 %v563
        %600 = vmatprep.subr.mxu0 0.0
        %601 = vmatpush1.msra.mxu0 %v562
        %602 = vmatprep.subr.mxu0 0.0
        %603 = vmatpush1.msra.mxu0 %v561
        %604 = vmatprep.subr.mxu0 0.0
        %605 = vmatpush1.msra.mxu0 %v560
        %606 = vmatprep.subr.mxu0 0.0
        %607 = vmatpush2.msra.mxu0 0.0
        %608 = vmatprep.subr.mxu0 0.0
        %609 = vmatpush2.msra.mxu0 0.0
        %610 = vmatprep.subr.mxu0 0.0
        %611 = vmatpush2.msra.mxu0 0.0
        %612 = vmatprep.subr.mxu0 0.0
        %613 = vmatpush2.msra.mxu0 0.0
        %614 = vmatprep.subr.mxu0 0.0
        %615 = vmatpush2.msra.mxu0 0.0
        %616 = vmatprep.subr.mxu0 0.0
        %617 = vmatpush2.msra.mxu0 0.0
        %618 = vmatprep.subr.mxu0 0.0
        %619 = vmatpush2.msra.mxu0 0.0
        %620 = vmatprep.subr.mxu0 0.0
        %621 = vmatpush2.msra.mxu0 0.0
        %622 = vmatprep.subr.mxu0 0.0
        %623 = vmatpush2.msra.mxu0 0.0
        %624 = vmatprep.subr.mxu0 0.0
        %625 = vmatpush2.msra.mxu0 0.0
        %626 = vmatprep.subr.mxu0 0.0
        %627 = vmatpush2.msra.mxu0 0.0
        %628 = vmatprep.subr.mxu0 0.0
        %629 = vmatpush2.msra.mxu0 0.0
        %630 = vmatprep.subr.mxu0 0.0
        %631 = vmatpush2.msra.mxu0 0.0
        %632 = vmatprep.subr.mxu0 0.0
        %633 = vmatpush2.msra.mxu0 0.0
        %634 = vmatprep.subr.mxu0 0.0
        %635 = vmatpush2.msra.mxu0 0.0
        %636 = vmatprep.subr.mxu0 0.0
        %637 = vmatpush2.msra.mxu0 0.0
        %638 = vmatprep.mubr.f32.mxu0 0.0
        %639 = vmatmul.mubr.f32.gmra.mxu0 %v572
        %v640 = vpop.f32.mrf.mxu0
        %v641 = vadd.f32 %v569, %v640
        %v642 = vpop.f32.mrf.mxu0
        %643 = vdwg.mxu0
        %v644 = vld [vmem:[%s7] sm:$0xff]
        %v645 = vld [vmem:[%s7 + $0x8] sm:$0xff]
        %v646 = vld [vmem:[%s7 + $0x10] sm:$0xff]
        %v647 = vld [vmem:[%s7 + $0x18] sm:$0xff]
        %v648 = vld [vmem:[%s8] sm:$0x1]
        %v650 = vlaneseq
        %v651 = vshrl.u32 %v650, 7
        %v652 = vsub.s32 0, %v651
        %v653 = vrot.slane %v648, %v652
        %v656 = vsel %vm486, %v474, 0
        %658 = vmatprep.subr.mxu0 0.0
        %659 = vmatpush1.msra.mxu0 0.0
        %660 = vmatprep.subr.mxu0 0.0
        %661 = vmatpush1.msra.mxu0 0.0
        %662 = vmatprep.subr.mxu0 0.0
        %663 = vmatpush1.msra.mxu0 0.0
        %664 = vmatprep.subr.mxu0 0.0
        %665 = vmatpush1.msra.mxu0 0.0
        %666 = vmatprep.subr.mxu0 0.0
        %667 = vmatpush1.msra.mxu0 0.0
        %668 = vmatprep.subr.mxu0 0.0
        %669 = vmatpush1.msra.mxu0 0.0
        %670 = vmatprep.subr.mxu0 0.0
        %671 = vmatpush1.msra.mxu0 0.0
        %672 = vmatprep.subr.mxu0 0.0
        %673 = vmatpush1.msra.mxu0 0.0
        %674 = vmatprep.subr.mxu0 0.0
        %675 = vmatpush1.msra.mxu0 0.0
        %676 = vmatprep.subr.mxu0 0.0
        %677 = vmatpush1.msra.mxu0 0.0
        %678 = vmatprep.subr.mxu0 0.0
        %679 = vmatpush1.msra.mxu0 0.0
        %680 = vmatprep.subr.mxu0 0.0
        %681 = vmatpush1.msra.mxu0 0.0
        %682 = vmatprep.subr.mxu0 0.0
        %683 = vmatpush1.msra.mxu0 %v647
        %684 = vmatprep.subr.mxu0 0.0
        %685 = vmatpush1.msra.mxu0 %v646
        %686 = vmatprep.subr.mxu0 0.0
        %687 = vmatpush1.msra.mxu0 %v645
        %688 = vmatprep.subr.mxu0 0.0
        %689 = vmatpush1.msra.mxu0 %v644
        %690 = vmatprep.subr.mxu0 0.0
        %691 = vmatpush2.msra.mxu0 0.0
        %692 = vmatprep.subr.mxu0 0.0
        %693 = vmatpush2.msra.mxu0 0.0
        %694 = vmatprep.subr.mxu0 0.0
        %695 = vmatpush2.msra.mxu0 0.0
        %696 = vmatprep.subr.mxu0 0.0
        %697 = vmatpush2.msra.mxu0 0.0
        %698 = vmatprep.subr.mxu0 0.0
        %699 = vmatpush2.msra.mxu0 0.0
        %700 = vmatprep.subr.mxu0 0.0
        %701 = vmatpush2.msra.mxu0 0.0
        %702 = vmatprep.subr.mxu0 0.0
        %703 = vmatpush2.msra.mxu0 0.0
        %704 = vmatprep.subr.mxu0 0.0
        %705 = vmatpush2.msra.mxu0 0.0
        %706 = vmatprep.subr.mxu0 0.0
        %707 = vmatpush2.msra.mxu0 0.0
        %708 = vmatprep.subr.mxu0 0.0
        %709 = vmatpush2.msra.mxu0 0.0
        %710 = vmatprep.subr.mxu0 0.0
        %711 = vmatpush2.msra.mxu0 0.0
        %712 = vmatprep.subr.mxu0 0.0
        %713 = vmatpush2.msra.mxu0 0.0
        %714 = vmatprep.subr.mxu0 0.0
        %715 = vmatpush2.msra.mxu0 0.0
        %716 = vmatprep.subr.mxu0 0.0
        %717 = vmatpush2.msra.mxu0 0.0
        %718 = vmatprep.subr.mxu0 0.0
        %719 = vmatpush2.msra.mxu0 0.0
        %720 = vmatprep.subr.mxu0 0.0
        %721 = vmatpush2.msra.mxu0 0.0
        %722 = vmatprep.mubr.f32.mxu0 0.0
        %723 = vmatmul.mubr.f32.gmra.mxu0 %v656
        %v724 = vpop.f32.mrf.mxu0
        %v725 = vadd.f32 %v653, %v724
        %v726 = vpop.f32.mrf.mxu0
        %727 = vdwg.mxu0
        %vm728 = vcmask 64512
        %v730 = vsel %vm728, %v557, 0
        %v733 = vsel %vm728, %v641, 0
        %735 = vmatprep.subr.mxu0 0.0
        %736 = vmatpush1.xpose.msra.mxu0 0.0
        %737 = vmatprep.subr.mxu0 0.0
        %738 = vmatpush1.xpose.msra.mxu0 0.0
        %739 = vmatprep.subr.mxu0 0.0
        %740 = vmatpush1.xpose.msra.mxu0 0.0
        %741 = vmatprep.subr.mxu0 0.0
        %742 = vmatpush1.xpose.msra.mxu0 0.0
        %743 = vmatprep.subr.mxu0 0.0
        %744 = vmatpush1.xpose.msra.mxu0 0.0
        %745 = vmatprep.subr.mxu0 0.0
        %746 = vmatpush1.xpose.msra.mxu0 0.0
        %747 = vmatprep.subr.mxu0 0.0
        %748 = vmatpush1.xpose.msra.mxu0 0.0
        %749 = vmatprep.subr.mxu0 0.0
        %750 = vmatpush1.xpose.msra.mxu0 0.0
        %751 = vmatprep.subr.mxu0 0.0
        %752 = vmatpush1.xpose.msra.mxu0 0.0
        %753 = vmatprep.subr.mxu0 0.0
        %754 = vmatpush1.xpose.msra.mxu0 0.0
        %755 = vmatprep.subr.mxu0 0.0
        %756 = vmatpush1.xpose.msra.mxu0 0.0
        %757 = vmatprep.subr.mxu0 0.0
        %758 = vmatpush1.xpose.msra.mxu0 0.0
        %759 = vmatprep.subr.mxu0 0.0
        %760 = vmatpush1.xpose.msra.mxu0 0.0
        %761 = vmatprep.subr.mxu0 0.0
        %762 = vmatpush1.xpose.msra.mxu0 0.0
        %763 = vmatprep.subr.mxu0 0.0
        %764 = vmatpush1.xpose.msra.mxu0 0.0
        %765 = vmatprep.subr.mxu0 0.0
        %766 = vmatpush1.xpose.msra.mxu0 %v733
        %767 = vmatprep.subr.mxu0 0.0
        %768 = vmatpush2.xpose.msra.mxu0 0.0
        %769 = vmatprep.subr.mxu0 0.0
        %770 = vmatpush2.xpose.msra.mxu0 0.0
        %771 = vmatprep.subr.mxu0 0.0
        %772 = vmatpush2.xpose.msra.mxu0 0.0
        %773 = vmatprep.subr.mxu0 0.0
        %774 = vmatpush2.xpose.msra.mxu0 0.0
        %775 = vmatprep.subr.mxu0 0.0
        %776 = vmatpush2.xpose.msra.mxu0 0.0
        %777 = vmatprep.subr.mxu0 0.0
        %778 = vmatpush2.xpose.msra.mxu0 0.0
        %779 = vmatprep.subr.mxu0 0.0
        %780 = vmatpush2.xpose.msra.mxu0 0.0
        %781 = vmatprep.subr.mxu0 0.0
        %782 = vmatpush2.xpose.msra.mxu0 0.0
        %783 = vmatprep.subr.mxu0 0.0
        %784 = vmatpush2.xpose.msra.mxu0 0.0
        %785 = vmatprep.subr.mxu0 0.0
        %786 = vmatpush2.xpose.msra.mxu0 0.0
        %787 = vmatprep.subr.mxu0 0.0
        %788 = vmatpush2.xpose.msra.mxu0 0.0
        %789 = vmatprep.subr.mxu0 0.0
        %790 = vmatpush2.xpose.msra.mxu0 0.0
        %791 = vmatprep.subr.mxu0 0.0
        %792 = vmatpush2.xpose.msra.mxu0 0.0
        %793 = vmatprep.subr.mxu0 0.0
        %794 = vmatpush2.xpose.msra.mxu0 0.0
        %795 = vmatprep.subr.mxu0 0.0
        %796 = vmatpush2.xpose.msra.mxu0 0.0
        %797 = vmatprep.subr.mxu0 0.0
        %798 = vmatpush2.xpose.msra.mxu0 0.0
        %799 = vmatprep.mubr.f32.mxu0 0.0
        %800 = vmatmul.mubr.f32.gmra.mxu0 %v730
        %v801 = vpop.f32.mrf.mxu0
        %v802 = vadd.f32 0.0, %v801
        %v803 = vpop.f32.mrf.mxu0
        %804 = vdwg.mxu0
        %v806 = vsel %vm728, %v802, 0
        %808 = vmatprep.subr.mxu0 0.0
        %809 = vmatpush1.msra.mxu0 0.0
        %810 = vmatprep.subr.mxu0 0.0
        %811 = vmatpush1.msra.mxu0 0.0
        %812 = vmatprep.subr.mxu0 0.0
        %813 = vmatpush1.msra.mxu0 0.0
        %814 = vmatprep.subr.mxu0 0.0
        %815 = vmatpush1.msra.mxu0 0.0
        %816 = vmatprep.subr.mxu0 0.0
        %817 = vmatpush1.msra.mxu0 0.0
        %818 = vmatprep.subr.mxu0 0.0
        %819 = vmatpush1.msra.mxu0 0.0
        %820 = vmatprep.subr.mxu0 0.0
        %821 = vmatpush1.msra.mxu0 0.0
        %822 = vmatprep.subr.mxu0 0.0
        %823 = vmatpush1.msra.mxu0 0.0
        %824 = vmatprep.subr.mxu0 0.0
        %825 = vmatpush1.msra.mxu0 0.0
        %826 = vmatprep.subr.mxu0 0.0
        %827 = vmatpush1.msra.mxu0 0.0
        %828 = vmatprep.subr.mxu0 0.0
        %829 = vmatpush1.msra.mxu0 0.0
        %830 = vmatprep.subr.mxu0 0.0
        %831 = vmatpush1.msra.mxu0 0.0
        %832 = vmatprep.subr.mxu0 0.0
        %833 = vmatpush1.msra.mxu0 0.0
        %834 = vmatprep.subr.mxu0 0.0
        %835 = vmatpush1.msra.mxu0 0.0
        %836 = vmatprep.subr.mxu0 0.0
        %837 = vmatpush1.msra.mxu0 0.0
        %838 = vmatprep.subr.mxu0 0.0
        %839 = vmatpush1.msra.mxu0 %v725
        %840 = vmatprep.subr.mxu0 0.0
        %841 = vmatpush2.msra.mxu0 0.0
        %842 = vmatprep.subr.mxu0 0.0
        %843 = vmatpush2.msra.mxu0 0.0
        %844 = vmatprep.subr.mxu0 0.0
        %845 = vmatpush2.msra.mxu0 0.0
        %846 = vmatprep.subr.mxu0 0.0
        %847 = vmatpush2.msra.mxu0 0.0
        %848 = vmatprep.subr.mxu0 0.0
        %849 = vmatpush2.msra.mxu0 0.0
        %850 = vmatprep.subr.mxu0 0.0
        %851 = vmatpush2.msra.mxu0 0.0
        %852 = vmatprep.subr.mxu0 0.0
        %853 = vmatpush2.msra.mxu0 0.0
        %854 = vmatprep.subr.mxu0 0.0
        %855 = vmatpush2.msra.mxu0 0.0
        %856 = vmatprep.subr.mxu0 0.0
        %857 = vmatpush2.msra.mxu0 0.0
        %858 = vmatprep.subr.mxu0 0.0
        %859 = vmatpush2.msra.mxu0 0.0
        %860 = vmatprep.subr.mxu0 0.0
        %861 = vmatpush2.msra.mxu0 0.0
        %862 = vmatprep.subr.mxu0 0.0
        %863 = vmatpush2.msra.mxu0 0.0
        %864 = vmatprep.subr.mxu0 0.0
        %865 = vmatpush2.msra.mxu0 0.0
        %866 = vmatprep.subr.mxu0 0.0
        %867 = vmatpush2.msra.mxu0 0.0
        %868 = vmatprep.subr.mxu0 0.0
        %869 = vmatpush2.msra.mxu0 0.0
        %870 = vmatprep.subr.mxu0 0.0
        %871 = vmatpush2.msra.mxu0 0.0
        %872 = vmatprep.mubr.f32.mxu0 0.0
        %873 = vmatmul.mubr.f32.gmra.mxu0 %v806
        %v874 = vpop.f32.mrf.mxu0
        %v875 = vadd.f32 0.0, %v874
        %v876 = vpop.f32.mrf.mxu0
        %877 = vdwg.mxu0
        %v878 = vld [vmem:[%s9] sm:$0x1]
        %v880 = vlaneseq
        %v881 = vshrl.u32 %v880, 7
        %v882 = vsub.s32 0, %v881
        %v883 = vrot.slane %v878, %v882
        %v885 = vmul.f32 %v875, %v883
        %v886 = vsel %vm728, %v885, 0.0
        %887 = vadd.xlane.f32.xlu0 %v886
        %v888 = vpop.xlane.xlu0 %887
        %v889 = vld [vmem:[#allocation2] sm:$0x1]
        %v891 = vlaneseq
        %v892 = vshrl.u32 %v891, 7
        %v893 = vsub.s32 0, %v892
        %v894 = vrot.slane %v889, %v893
        %v896 = vadd.f32 %v888, %v894
        %vm897 = vcmask 7168
        %v898 = vsel %vm897, %v896, -inf
        %v899 = vrot.slane %v898, 4
        %v900 = vmax.f32 %v898, %v899
        %v901 = vrot.slane %v900, 2
        %v902 = vmax.f32 %v900, %v901
        %v903 = vrot.slane %v902, 1
        %v904 = vmax.f32 %v902, %v903
        %v905 = vsub.f32 %v896, %v904
        %v906 = vmul.f32 %v905, 1.442695
        %v907 = vpow.pop %v906
        %v908 = vsel %vm897, %v907, 0.0
        %v909 = vrot.slane %v908, 4
        %v910 = vadd.f32 %v908, %v909
        %v911 = vrot.slane %v910, 2
        %v912 = vadd.f32 %v910, %v911
        %v913 = vrot.slane %v912, 1
        %v914 = vadd.f32 %v912, %v913
        %v915 = vrcp.pop %v914
        %v916 = vmul.f32 %v907, %v915
        %918 = vset.pattern.permute.xlu0 0
        %919 = vperm.xlu0 %918, %v916
        %v920 = vpop.permute.xlu0 %919
        %v922 = vmul.f32 %v920, %v802
        %s923 = scalar_lea.vmem %s3, 32
        %v924 = vld [vmem:[%s923] sm:$0xff]
        %v925 = vld [vmem:[%s923 + $0x8] sm:$0xff]
        %v926 = vld [vmem:[%s923 + $0x10] sm:$0xff]
        %v927 = vld [vmem:[%s923 + $0x18] sm:$0xff]
        %s928 = scalar_lea.vmem %s4, 1
        %v929 = vld [vmem:[%s928] sm:$0x1]
        %v931 = vlaneseq
        %v932 = vshrl.u32 %v931, 7
        %v933 = vsub.s32 0, %v932
        %v934 = vrot.slane %v929, %v933
        %936 = vmatprep.subr.mxu0 0.0
        %937 = vmatpush1.msra.mxu0 0.0
        %938 = vmatprep.subr.mxu0 0.0
        %939 = vmatpush1.msra.mxu0 0.0
        %940 = vmatprep.subr.mxu0 0.0
        %941 = vmatpush1.msra.mxu0 0.0
        %942 = vmatprep.subr.mxu0 0.0
        %943 = vmatpush1.msra.mxu0 0.0
        %944 = vmatprep.subr.mxu0 0.0
        %945 = vmatpush1.msra.mxu0 0.0
        %946 = vmatprep.subr.mxu0 0.0
        %947 = vmatpush1.msra.mxu0 0.0
        %948 = vmatprep.subr.mxu0 0.0
        %949 = vmatpush1.msra.mxu0 0.0
        %950 = vmatprep.subr.mxu0 0.0
        %951 = vmatpush1.msra.mxu0 0.0
        %952 = vmatprep.subr.mxu0 0.0
        %953 = vmatpush1.msra.mxu0 0.0
        %954 = vmatprep.subr.mxu0 0.0
        %955 = vmatpush1.msra.mxu0 0.0
        %956 = vmatprep.subr.mxu0 0.0
        %957 = vmatpush1.msra.mxu0 0.0
        %958 = vmatprep.subr.mxu0 0.0
        %959 = vmatpush1.msra.mxu0 0.0
        %960 = vmatprep.subr.mxu0 0.0
        %961 = vmatpush1.msra.mxu0 %v927
        %962 = vmatprep.subr.mxu0 0.0
        %963 = vmatpush1.msra.mxu0 %v926
        %964 = vmatprep.subr.mxu0 0.0
        %965 = vmatpush1.msra.mxu0 %v925
        %966 = vmatprep.subr.mxu0 0.0
        %967 = vmatpush1.msra.mxu0 %v924
        %968 = vmatprep.subr.mxu0 0.0
        %969 = vmatpush2.msra.mxu0 0.0
        %970 = vmatprep.subr.mxu0 0.0
        %971 = vmatpush2.msra.mxu0 0.0
        %972 = vmatprep.subr.mxu0 0.0
        %973 = vmatpush2.msra.mxu0 0.0
        %974 = vmatprep.subr.mxu0 0.0
        %975 = vmatpush2.msra.mxu0 0.0
        %976 = vmatprep.subr.mxu0 0.0
        %977 = vmatpush2.msra.mxu0 0.0
        %978 = vmatprep.subr.mxu0 0.0
        %979 = vmatpush2.msra.mxu0 0.0
        %980 = vmatprep.subr.mxu0 0.0
        %981 = vmatpush2.msra.mxu0 0.0
        %982 = vmatprep.subr.mxu0 0.0
        %983 = vmatpush2.msra.mxu0 0.0
        %984 = vmatprep.subr.mxu0 0.0
        %985 = vmatpush2.msra.mxu0 0.0
        %986 = vmatprep.subr.mxu0 0.0
        %987 = vmatpush2.msra.mxu0 0.0
        %988 = vmatprep.subr.mxu0 0.0
        %989 = vmatpush2.msra.mxu0 0.0
        %990 = vmatprep.subr.mxu0 0.0
        %991 = vmatpush2.msra.mxu0 0.0
        %992 = vmatprep.subr.mxu0 0.0
        %993 = vmatpush2.msra.mxu0 0.0
        %994 = vmatprep.subr.mxu0 0.0
        %995 = vmatpush2.msra.mxu0 0.0
        %996 = vmatprep.subr.mxu0 0.0
        %997 = vmatpush2.msra.mxu0 0.0
        %998 = vmatprep.subr.mxu0 0.0
        %999 = vmatpush2.msra.mxu0 0.0
        %1000 = vmatprep.mubr.f32.mxu0 0.0
        %1001 = vmatmul.mubr.f32.gmra.mxu0 %v488
        %v1002 = vpop.f32.mrf.mxu0
        %v1003 = vadd.f32 %v934, %v1002
        %v1004 = vpop.f32.mrf.mxu0
        %1005 = vdwg.mxu0
        %s1006 = scalar_lea.vmem %s5, 32
        %v1007 = vld [vmem:[%s1006] sm:$0xff]
        %v1008 = vld [vmem:[%s1006 + $0x8] sm:$0xff]
        %v1009 = vld [vmem:[%s1006 + $0x10] sm:$0xff]
        %v1010 = vld [vmem:[%s1006 + $0x18] sm:$0xff]
        %s1011 = scalar_lea.vmem %s6, 1
        %v1012 = vld [vmem:[%s1011] sm:$0x1]
        %v1014 = vlaneseq
        %v1015 = vshrl.u32 %v1014, 7
        %v1016 = vsub.s32 0, %v1015
        %v1017 = vrot.slane %v1012, %v1016
        %1019 = vmatprep.subr.mxu0 0.0
        %1020 = vmatpush1.msra.mxu0 0.0
        %1021 = vmatprep.subr.mxu0 0.0
        %1022 = vmatpush1.msra.mxu0 0.0
        %1023 = vmatprep.subr.mxu0 0.0
        %1024 = vmatpush1.msra.mxu0 0.0
        %1025 = vmatprep.subr.mxu0 0.0
        %1026 = vmatpush1.msra.mxu0 0.0
        %1027 = vmatprep.subr.mxu0 0.0
        %1028 = vmatpush1.msra.mxu0 0.0
        %1029 = vmatprep.subr.mxu0 0.0
        %1030 = vmatpush1.msra.mxu0 0.0
        %1031 = vmatprep.subr.mxu0 0.0
        %1032 = vmatpush1.msra.mxu0 0.0
        %1033 = vmatprep.subr.mxu0 0.0
        %1034 = vmatpush1.msra.mxu0 0.0
        %1035 = vmatprep.subr.mxu0 0.0
        %1036 = vmatpush1.msra.mxu0 0.0
        %1037 = vmatprep.subr.mxu0 0.0
        %1038 = vmatpush1.msra.mxu0 0.0
        %1039 = vmatprep.subr.mxu0 0.0
        %1040 = vmatpush1.msra.mxu0 0.0
        %1041 = vmatprep.subr.mxu0 0.0
        %1042 = vmatpush1.msra.mxu0 0.0
        %1043 = vmatprep.subr.mxu0 0.0
        %1044 = vmatpush1.msra.mxu0 %v1010
        %1045 = vmatprep.subr.mxu0 0.0
        %1046 = vmatpush1.msra.mxu0 %v1009
        %1047 = vmatprep.subr.mxu0 0.0
        %1048 = vmatpush1.msra.mxu0 %v1008
        %1049 = vmatprep.subr.mxu0 0.0
        %1050 = vmatpush1.msra.mxu0 %v1007
        %1051 = vmatprep.subr.mxu0 0.0
        %1052 = vmatpush2.msra.mxu0 0.0
        %1053 = vmatprep.subr.mxu0 0.0
        %1054 = vmatpush2.msra.mxu0 0.0
        %1055 = vmatprep.subr.mxu0 0.0
        %1056 = vmatpush2.msra.mxu0 0.0
        %1057 = vmatprep.subr.mxu0 0.0
        %1058 = vmatpush2.msra.mxu0 0.0
        %1059 = vmatprep.subr.mxu0 0.0
        %1060 = vmatpush2.msra.mxu0 0.0
        %1061 = vmatprep.subr.mxu0 0.0
        %1062 = vmatpush2.msra.mxu0 0.0
        %1063 = vmatprep.subr.mxu0 0.0
        %1064 = vmatpush2.msra.mxu0 0.0
        %1065 = vmatprep.subr.mxu0 0.0
        %1066 = vmatpush2.msra.mxu0 0.0
        %1067 = vmatprep.subr.mxu0 0.0
        %1068 = vmatpush2.msra.mxu0 0.0
        %1069 = vmatprep.subr.mxu0 0.0
        %1070 = vmatpush2.msra.mxu0 0.0
        %1071 = vmatprep.subr.mxu0 0.0
        %1072 = vmatpush2.msra.mxu0 0.0
        %1073 = vmatprep.subr.mxu0 0.0
        %1074 = vmatpush2.msra.mxu0 0.0
        %1075 = vmatprep.subr.mxu0 0.0
        %1076 = vmatpush2.msra.mxu0 0.0
        %1077 = vmatprep.subr.mxu0 0.0
        %1078 = vmatpush2.msra.mxu0 0.0
        %1079 = vmatprep.subr.mxu0 0.0
        %1080 = vmatpush2.msra.mxu0 0.0
        %1081 = vmatprep.subr.mxu0 0.0
        %1082 = vmatpush2.msra.mxu0 0.0
        %1083 = vmatprep.mubr.f32.mxu0 0.0
        %1084 = vmatmul.mubr.f32.gmra.mxu0 %v572
        %v1085 = vpop.f32.mrf.mxu0
        %v1086 = vadd.f32 %v1017, %v1085
        %v1087 = vpop.f32.mrf.mxu0
        %1088 = vdwg.mxu0
        %s1089 = scalar_lea.vmem %s7, 32
        %v1090 = vld [vmem:[%s1089] sm:$0xff]
        %v1091 = vld [vmem:[%s1089 + $0x8] sm:$0xff]
        %v1092 = vld [vmem:[%s1089 + $0x10] sm:$0xff]
        %v1093 = vld [vmem:[%s1089 + $0x18] sm:$0xff]
        %s1094 = scalar_lea.vmem %s8, 1
        %v1095 = vld [vmem:[%s1094] sm:$0x1]
        %v1097 = vlaneseq
        %v1098 = vshrl.u32 %v1097, 7
        %v1099 = vsub.s32 0, %v1098
        %v1100 = vrot.slane %v1095, %v1099
        %1102 = vmatprep.subr.mxu0 0.0
        %1103 = vmatpush1.msra.mxu0 0.0
        %1104 = vmatprep.subr.mxu0 0.0
        %1105 = vmatpush1.msra.mxu0 0.0
        %1106 = vmatprep.subr.mxu0 0.0
        %1107 = vmatpush1.msra.mxu0 0.0
        %1108 = vmatprep.subr.mxu0 0.0
        %1109 = vmatpush1.msra.mxu0 0.0
        %1110 = vmatprep.subr.mxu0 0.0
        %1111 = vmatpush1.msra.mxu0 0.0
        %1112 = vmatprep.subr.mxu0 0.0
        %1113 = vmatpush1.msra.mxu0 0.0
        %1114 = vmatprep.subr.mxu0 0.0
        %1115 = vmatpush1.msra.mxu0 0.0
        %1116 = vmatprep.subr.mxu0 0.0
        %1117 = vmatpush1.msra.mxu0 0.0
        %1118 = vmatprep.subr.mxu0 0.0
        %1119 = vmatpush1.msra.mxu0 0.0
        %1120 = vmatprep.subr.mxu0 0.0
        %1121 = vmatpush1.msra.mxu0 0.0
        %1122 = vmatprep.subr.mxu0 0.0
        %1123 = vmatpush1.msra.mxu0 0.0
        %1124 = vmatprep.subr.mxu0 0.0
        %1125 = vmatpush1.msra.mxu0 0.0
        %1126 = vmatprep.subr.mxu0 0.0
        %1127 = vmatpush1.msra.mxu0 %v1093
        %1128 = vmatprep.subr.mxu0 0.0
        %1129 = vmatpush1.msra.mxu0 %v1092
        %1130 = vmatprep.subr.mxu0 0.0
        %1131 = vmatpush1.msra.mxu0 %v1091
        %1132 = vmatprep.subr.mxu0 0.0
        %1133 = vmatpush1.msra.mxu0 %v1090
        %1134 = vmatprep.subr.mxu0 0.0
        %1135 = vmatpush2.msra.mxu0 0.0
        %1136 = vmatprep.subr.mxu0 0.0
        %1137 = vmatpush2.msra.mxu0 0.0
        %1138 = vmatprep.subr.mxu0 0.0
        %1139 = vmatpush2.msra.mxu0 0.0
        %1140 = vmatprep.subr.mxu0 0.0
        %1141 = vmatpush2.msra.mxu0 0.0
        %1142 = vmatprep.subr.mxu0 0.0
        %1143 = vmatpush2.msra.mxu0 0.0
        %1144 = vmatprep.subr.mxu0 0.0
        %1145 = vmatpush2.msra.mxu0 0.0
        %1146 = vmatprep.subr.mxu0 0.0
        %1147 = vmatpush2.msra.mxu0 0.0
        %1148 = vmatprep.subr.mxu0 0.0
        %1149 = vmatpush2.msra.mxu0 0.0
        %1150 = vmatprep.subr.mxu0 0.0
        %1151 = vmatpush2.msra.mxu0 0.0
        %1152 = vmatprep.subr.mxu0 0.0
        %1153 = vmatpush2.msra.mxu0 0.0
        %1154 = vmatprep.subr.mxu0 0.0
        %1155 = vmatpush2.msra.mxu0 0.0
        %1156 = vmatprep.subr.mxu0 0.0
        %1157 = vmatpush2.msra.mxu0 0.0
        %1158 = vmatprep.subr.mxu0 0.0
        %1159 = vmatpush2.msra.mxu0 0.0
        %1160 = vmatprep.subr.mxu0 0.0
        %1161 = vmatpush2.msra.mxu0 0.0
        %1162 = vmatprep.subr.mxu0 0.0
        %1163 = vmatpush2.msra.mxu0 0.0
        %1164 = vmatprep.subr.mxu0 0.0
        %1165 = vmatpush2.msra.mxu0 0.0
        %1166 = vmatprep.mubr.f32.mxu0 0.0
        %1167 = vmatmul.mubr.f32.gmra.mxu0 %v656
        %v1168 = vpop.f32.mrf.mxu0
        %v1169 = vadd.f32 %v1100, %v1168
        %v1170 = vpop.f32.mrf.mxu0
        %1171 = vdwg.mxu0
        %v1173 = vsel %vm728, %v1003, 0
        %v1176 = vsel %vm728, %v1086, 0
        %1178 = vmatprep.subr.mxu0 0.0
        %1179 = vmatpush1.xpose.msra.mxu0 0.0
        %1180 = vmatprep.subr.mxu0 0.0
        %1181 = vmatpush1.xpose.msra.mxu0 0.0
        %1182 = vmatprep.subr.mxu0 0.0
        %1183 = vmatpush1.xpose.msra.mxu0 0.0
        %1184 = vmatprep.subr.mxu0 0.0
        %1185 = vmatpush1.xpose.msra.mxu0 0.0
        %1186 = vmatprep.subr.mxu0 0.0
        %1187 = vmatpush1.xpose.msra.mxu0 0.0
        %1188 = vmatprep.subr.mxu0 0.0
        %1189 = vmatpush1.xpose.msra.mxu0 0.0
        %1190 = vmatprep.subr.mxu0 0.0
        %1191 = vmatpush1.xpose.msra.mxu0 0.0
        %1192 = vmatprep.subr.mxu0 0.0
        %1193 = vmatpush1.xpose.msra.mxu0 0.0
        %1194 = vmatprep.subr.mxu0 0.0
        %1195 = vmatpush1.xpose.msra.mxu0 0.0
        %1196 = vmatprep.subr.mxu0 0.0
        %1197 = vmatpush1.xpose.msra.mxu0 0.0
        %1198 = vmatprep.subr.mxu0 0.0
        %1199 = vmatpush1.xpose.msra.mxu0 0.0
        %1200 = vmatprep.subr.mxu0 0.0
        %1201 = vmatpush1.xpose.msra.mxu0 0.0
        %1202 = vmatprep.subr.mxu0 0.0
        %1203 = vmatpush1.xpose.msra.mxu0 0.0
        %1204 = vmatprep.subr.mxu0 0.0
        %1205 = vmatpush1.xpose.msra.mxu0 0.0
        %1206 = vmatprep.subr.mxu0 0.0
        %1207 = vmatpush1.xpose.msra.mxu0 0.0
        %1208 = vmatprep.subr.mxu0 0.0
        %1209 = vmatpush1.xpose.msra.mxu0 %v1176
        %1210 = vmatprep.subr.mxu0 0.0
        %1211 = vmatpush2.xpose.msra.mxu0 0.0
        %1212 = vmatprep.subr.mxu0 0.0
        %1213 = vmatpush2.xpose.msra.mxu0 0.0
        %1214 = vmatprep.subr.mxu0 0.0
        %1215 = vmatpush2.xpose.msra.mxu0 0.0
        %1216 = vmatprep.subr.mxu0 0.0
        %1217 = vmatpush2.xpose.msra.mxu0 0.0
        %1218 = vmatprep.subr.mxu0 0.0
        %1219 = vmatpush2.xpose.msra.mxu0 0.0
        %1220 = vmatprep.subr.mxu0 0.0
        %1221 = vmatpush2.xpose.msra.mxu0 0.0
        %1222 = vmatprep.subr.mxu0 0.0
        %1223 = vmatpush2.xpose.msra.mxu0 0.0
        %1224 = vmatprep.subr.mxu0 0.0
        %1225 = vmatpush2.xpose.msra.mxu0 0.0
        %1226 = vmatprep.subr.mxu0 0.0
        %1227 = vmatpush2.xpose.msra.mxu0 0.0
        %1228 = vmatprep.subr.mxu0 0.0
        %1229 = vmatpush2.xpose.msra.mxu0 0.0
        %1230 = vmatprep.subr.mxu0 0.0
        %1231 = vmatpush2.xpose.msra.mxu0 0.0
        %1232 = vmatprep.subr.mxu0 0.0
        %1233 = vmatpush2.xpose.msra.mxu0 0.0
        %1234 = vmatprep.subr.mxu0 0.0
        %1235 = vmatpush2.xpose.msra.mxu0 0.0
        %1236 = vmatprep.subr.mxu0 0.0
        %1237 = vmatpush2.xpose.msra.mxu0 0.0
        %1238 = vmatprep.subr.mxu0 0.0
        %1239 = vmatpush2.xpose.msra.mxu0 0.0
        %1240 = vmatprep.subr.mxu0 0.0
        %1241 = vmatpush2.xpose.msra.mxu0 0.0
        %1242 = vmatprep.mubr.f32.mxu0 0.0
        %1243 = vmatmul.mubr.f32.gmra.mxu0 %v1173
        %v1244 = vpop.f32.mrf.mxu0
        %v1245 = vadd.f32 0.0, %v1244
        %v1246 = vpop.f32.mrf.mxu0
        %1247 = vdwg.mxu0
        %v1249 = vsel %vm728, %v1245, 0
        %1251 = vmatprep.subr.mxu0 0.0
        %1252 = vmatpush1.msra.mxu0 0.0
        %1253 = vmatprep.subr.mxu0 0.0
        %1254 = vmatpush1.msra.mxu0 0.0
        %1255 = vmatprep.subr.mxu0 0.0
        %1256 = vmatpush1.msra.mxu0 0.0
        %1257 = vmatprep.subr.mxu0 0.0
        %1258 = vmatpush1.msra.mxu0 0.0
        %1259 = vmatprep.subr.mxu0 0.0
        %1260 = vmatpush1.msra.mxu0 0.0
        %1261 = vmatprep.subr.mxu0 0.0
        %1262 = vmatpush1.msra.mxu0 0.0
        %1263 = vmatprep.subr.mxu0 0.0
        %1264 = vmatpush1.msra.mxu0 0.0
        %1265 = vmatprep.subr.mxu0 0.0
        %1266 = vmatpush1.msra.mxu0 0.0
        %1267 = vmatprep.subr.mxu0 0.0
        %1268 = vmatpush1.msra.mxu0 0.0
        %1269 = vmatprep.subr.mxu0 0.0
        %1270 = vmatpush1.msra.mxu0 0.0
        %1271 = vmatprep.subr.mxu0 0.0
        %1272 = vmatpush1.msra.mxu0 0.0
        %1273 = vmatprep.subr.mxu0 0.0
        %1274 = vmatpush1.msra.mxu0 0.0
        %1275 = vmatprep.subr.mxu0 0.0
        %1276 = vmatpush1.msra.mxu0 0.0
        %1277 = vmatprep.subr.mxu0 0.0
        %1278 = vmatpush1.msra.mxu0 0.0
        %1279 = vmatprep.subr.mxu0 0.0
        %1280 = vmatpush1.msra.mxu0 0.0
        %1281 = vmatprep.subr.mxu0 0.0
        %1282 = vmatpush1.msra.mxu0 %v1169
        %1283 = vmatprep.subr.mxu0 0.0
        %1284 = vmatpush2.msra.mxu0 0.0
        %1285 = vmatprep.subr.mxu0 0.0
        %1286 = vmatpush2.msra.mxu0 0.0
        %1287 = vmatprep.subr.mxu0 0.0
        %1288 = vmatpush2.msra.mxu0 0.0
        %1289 = vmatprep.subr.mxu0 0.0
        %1290 = vmatpush2.msra.mxu0 0.0
        %1291 = vmatprep.subr.mxu0 0.0
        %1292 = vmatpush2.msra.mxu0 0.0
        %1293 = vmatprep.subr.mxu0 0.0
        %1294 = vmatpush2.msra.mxu0 0.0
        %1295 = vmatprep.subr.mxu0 0.0
        %1296 = vmatpush2.msra.mxu0 0.0
        %1297 = vmatprep.subr.mxu0 0.0
        %1298 = vmatpush2.msra.mxu0 0.0
        %1299 = vmatprep.subr.mxu0 0.0
        %1300 = vmatpush2.msra.mxu0 0.0
        %1301 = vmatprep.subr.mxu0 0.0
        %1302 = vmatpush2.msra.mxu0 0.0
        %1303 = vmatprep.subr.mxu0 0.0
        %1304 = vmatpush2.msra.mxu0 0.0
        %1305 = vmatprep.subr.mxu0 0.0
        %1306 = vmatpush2.msra.mxu0 0.0
        %1307 = vmatprep.subr.mxu0 0.0
        %1308 = vmatpush2.msra.mxu0 0.0
        %1309 = vmatprep.subr.mxu0 0.0
        %1310 = vmatpush2.msra.mxu0 0.0
        %1311 = vmatprep.subr.mxu0 0.0
        %1312 = vmatpush2.msra.mxu0 0.0
        %1313 = vmatprep.subr.mxu0 0.0
        %1314 = vmatpush2.msra.mxu0 0.0
        %1315 = vmatprep.mubr.f32.mxu0 0.0
        %1316 = vmatmul.mubr.f32.gmra.mxu0 %v1249
        %v1317 = vpop.f32.mrf.mxu0
        %v1318 = vadd.f32 0.0, %v1317
        %v1319 = vpop.f32.mrf.mxu0
        %1320 = vdwg.mxu0
        %v1321 = vmul.f32 %v1318, %v883
        %v1322 = vsel %vm728, %v1321, 0.0
        %1323 = vadd.xlane.f32.xlu0 %v1322
        %v1324 = vpop.xlane.xlu0 %1323
        %v1325 = vadd.f32 %v1324, %v894
        %v1326 = vsel %vm897, %v1325, -inf
        %v1327 = vrot.slane %v1326, 4
        %v1328 = vmax.f32 %v1326, %v1327
        %v1329 = vrot.slane %v1328, 2
        %v1330 = vmax.f32 %v1328, %v1329
        %v1331 = vrot.slane %v1330, 1
        %v1332 = vmax.f32 %v1330, %v1331
        %v1333 = vsub.f32 %v1325, %v1332
        %v1334 = vmul.f32 %v1333, 1.442695
        %v1335 = vpow.pop %v1334
        %v1336 = vsel %vm897, %v1335, 0.0
        %v1337 = vrot.slane %v1336, 4
        %v1338 = vadd.f32 %v1336, %v1337
        %v1339 = vrot.slane %v1338, 2
        %v1340 = vadd.f32 %v1338, %v1339
        %v1341 = vrot.slane %v1340, 1
        %v1342 = vadd.f32 %v1340, %v1341
        %v1343 = vrcp.pop %v1342
        %v1344 = vmul.f32 %v1335, %v1343
        %1346 = vset.pattern.permute.xlu0 0
        %1347 = vperm.xlu0 %1346, %v1344
        %v1348 = vpop.permute.xlu0 %1347
        %v1350 = vmul.f32 %v1348, %v1245
        %v1351 = vadd.f32 %v922, %v1350
        %s1352 = scalar_lea.vmem %s3, 64
        %v1353 = vld [vmem:[%s1352] sm:$0xff]
        %v1354 = vld [vmem:[%s1352 + $0x8] sm:$0xff]
        %v1355 = vld [vmem:[%s1352 + $0x10] sm:$0xff]
        %v1356 = vld [vmem:[%s1352 + $0x18] sm:$0xff]
        %s1357 = scalar_lea.vmem %s4, 2
        %v1358 = vld [vmem:[%s1357] sm:$0x1]
        %v1360 = vlaneseq
        %v1361 = vshrl.u32 %v1360, 7
        %v1362 = vsub.s32 0, %v1361
        %v1363 = vrot.slane %v1358, %v1362
        %1365 = vmatprep.subr.mxu0 0.0
        %1366 = vmatpush1.msra.mxu0 0.0
        %1367 = vmatprep.subr.mxu0 0.0
        %1368 = vmatpush1.msra.mxu0 0.0
        %1369 = vmatprep.subr.mxu0 0.0
        %1370 = vmatpush1.msra.mxu0 0.0
        %1371 = vmatprep.subr.mxu0 0.0
        %1372 = vmatpush1.msra.mxu0 0.0
        %1373 = vmatprep.subr.mxu0 0.0
        %1374 = vmatpush1.msra.mxu0 0.0
        %1375 = vmatprep.subr.mxu0 0.0
        %1376 = vmatpush1.msra.mxu0 0.0
        %1377 = vmatprep.subr.mxu0 0.0
        %1378 = vmatpush1.msra.mxu0 0.0
        %1379 = vmatprep.subr.mxu0 0.0
        %1380 = vmatpush1.msra.mxu0 0.0
        %1381 = vmatprep.subr.mxu0 0.0
        %1382 = vmatpush1.msra.mxu0 0.0
        %1383 = vmatprep.subr.mxu0 0.0
        %1384 = vmatpush1.msra.mxu0 0.0
        %1385 = vmatprep.subr.mxu0 0.0
        %1386 = vmatpush1.msra.mxu0 0.0
        %1387 = vmatprep.subr.mxu0 0.0
        %1388 = vmatpush1.msra.mxu0 0.0
        %1389 = vmatprep.subr.mxu0 0.0
        %1390 = vmatpush1.msra.mxu0 %v1356
        %1391 = vmatprep.subr.mxu0 0.0
        %1392 = vmatpush1.msra.mxu0 %v1355
        %1393 = vmatprep.subr.mxu0 0.0
        %1394 = vmatpush1.msra.mxu0 %v1354
        %1395 = vmatprep.subr.mxu0 0.0
        %1396 = vmatpush1.msra.mxu0 %v1353
        %1397 = vmatprep.subr.mxu0 0.0
        %1398 = vmatpush2.msra.mxu0 0.0
        %1399 = vmatprep.subr.mxu0 0.0
        %1400 = vmatpush2.msra.mxu0 0.0
        %1401 = vmatprep.subr.mxu0 0.0
        %1402 = vmatpush2.msra.mxu0 0.0
        %1403 = vmatprep.subr.mxu0 0.0
        %1404 = vmatpush2.msra.mxu0 0.0
        %1405 = vmatprep.subr.mxu0 0.0
        %1406 = vmatpush2.msra.mxu0 0.0
        %1407 = vmatprep.subr.mxu0 0.0
        %1408 = vmatpush2.msra.mxu0 0.0
        %1409 = vmatprep.subr.mxu0 0.0
        %1410 = vmatpush2.msra.mxu0 0.0
        %1411 = vmatprep.subr.mxu0 0.0
        %1412 = vmatpush2.msra.mxu0 0.0
        %1413 = vmatprep.subr.mxu0 0.0
        %1414 = vmatpush2.msra.mxu0 0.0
        %1415 = vmatprep.subr.mxu0 0.0
        %1416 = vmatpush2.msra.mxu0 0.0
        %1417 = vmatprep.subr.mxu0 0.0
        %1418 = vmatpush2.msra.mxu0 0.0
        %1419 = vmatprep.subr.mxu0 0.0
        %1420 = vmatpush2.msra.mxu0 0.0
        %1421 = vmatprep.subr.mxu0 0.0
        %1422 = vmatpush2.msra.mxu0 0.0
        %1423 = vmatprep.subr.mxu0 0.0
        %1424 = vmatpush2.msra.mxu0 0.0
        %1425 = vmatprep.subr.mxu0 0.0
        %1426 = vmatpush2.msra.mxu0 0.0
        %1427 = vmatprep.subr.mxu0 0.0
        %1428 = vmatpush2.msra.mxu0 0.0
        %1429 = vmatprep.mubr.f32.mxu0 0.0
        %1430 = vmatmul.mubr.f32.gmra.mxu0 %v488
        %v1431 = vpop.f32.mrf.mxu0
        %v1432 = vadd.f32 %v1363, %v1431
        %v1433 = vpop.f32.mrf.mxu0
        %1434 = vdwg.mxu0
        %s1435 = scalar_lea.vmem %s5, 64
        %v1436 = vld [vmem:[%s1435] sm:$0xff]
        %v1437 = vld [vmem:[%s1435 + $0x8] sm:$0xff]
        %v1438 = vld [vmem:[%s1435 + $0x10] sm:$0xff]
        %v1439 = vld [vmem:[%s1435 + $0x18] sm:$0xff]
        %s1440 = scalar_lea.vmem %s6, 2
        %v1441 = vld [vmem:[%s1440] sm:$0x1]
        %v1443 = vlaneseq
        %v1444 = vshrl.u32 %v1443, 7
        %v1445 = vsub.s32 0, %v1444
        %v1446 = vrot.slane %v1441, %v1445
        %1448 = vmatprep.subr.mxu0 0.0
        %1449 = vmatpush1.msra.mxu0 0.0
        %1450 = vmatprep.subr.mxu0 0.0
        %1451 = vmatpush1.msra.mxu0 0.0
        %1452 = vmatprep.subr.mxu0 0.0
        %1453 = vmatpush1.msra.mxu0 0.0
        %1454 = vmatprep.subr.mxu0 0.0
        %1455 = vmatpush1.msra.mxu0 0.0
        %1456 = vmatprep.subr.mxu0 0.0
        %1457 = vmatpush1.msra.mxu0 0.0
        %1458 = vmatprep.subr.mxu0 0.0
        %1459 = vmatpush1.msra.mxu0 0.0
        %1460 = vmatprep.subr.mxu0 0.0
        %1461 = vmatpush1.msra.mxu0 0.0
        %1462 = vmatprep.subr.mxu0 0.0
        %1463 = vmatpush1.msra.mxu0 0.0
        %1464 = vmatprep.subr.mxu0 0.0
        %1465 = vmatpush1.msra.mxu0 0.0
        %1466 = vmatprep.subr.mxu0 0.0
        %1467 = vmatpush1.msra.mxu0 0.0
        %1468 = vmatprep.subr.mxu0 0.0
        %1469 = vmatpush1.msra.mxu0 0.0
        %1470 = vmatprep.subr.mxu0 0.0
        %1471 = vmatpush1.msra.mxu0 0.0
        %1472 = vmatprep.subr.mxu0 0.0
        %1473 = vmatpush1.msra.mxu0 %v1439
        %1474 = vmatprep.subr.mxu0 0.0
        %1475 = vmatpush1.msra.mxu0 %v1438
        %1476 = vmatprep.subr.mxu0 0.0
        %1477 = vmatpush1.msra.mxu0 %v1437
        %1478 = vmatprep.subr.mxu0 0.0
        %1479 = vmatpush1.msra.mxu0 %v1436
        %1480 = vmatprep.subr.mxu0 0.0
        %1481 = vmatpush2.msra.mxu0 0.0
        %1482 = vmatprep.subr.mxu0 0.0
        %1483 = vmatpush2.msra.mxu0 0.0
        %1484 = vmatprep.subr.mxu0 0.0
        %1485 = vmatpush2.msra.mxu0 0.0
        %1486 = vmatprep.subr.mxu0 0.0
        %1487 = vmatpush2.msra.mxu0 0.0
        %1488 = vmatprep.subr.mxu0 0.0
        %1489 = vmatpush2.msra.mxu0 0.0
        %1490 = vmatprep.subr.mxu0 0.0
        %1491 = vmatpush2.msra.mxu0 0.0
        %1492 = vmatprep.subr.mxu0 0.0
        %1493 = vmatpush2.msra.mxu0 0.0
        %1494 = vmatprep.subr.mxu0 0.0
        %1495 = vmatpush2.msra.mxu0 0.0
        %1496 = vmatprep.subr.mxu0 0.0
        %1497 = vmatpush2.msra.mxu0 0.0
        %1498 = vmatprep.subr.mxu0 0.0
        %1499 = vmatpush2.msra.mxu0 0.0
        %1500 = vmatprep.subr.mxu0 0.0
        %1501 = vmatpush2.msra.mxu0 0.0
        %1502 = vmatprep.subr.mxu0 0.0
        %1503 = vmatpush2.msra.mxu0 0.0
        %1504 = vmatprep.subr.mxu0 0.0
        %1505 = vmatpush2.msra.mxu0 0.0
        %1506 = vmatprep.subr.mxu0 0.0
        %1507 = vmatpush2.msra.mxu0 0.0
        %1508 = vmatprep.subr.mxu0 0.0
        %1509 = vmatpush2.msra.mxu0 0.0
        %1510 = vmatprep.subr.mxu0 0.0
        %1511 = vmatpush2.msra.mxu0 0.0
        %1512 = vmatprep.mubr.f32.mxu0 0.0
        %1513 = vmatmul.mubr.f32.gmra.mxu0 %v572
        %v1514 = vpop.f32.mrf.mxu0
        %v1515 = vadd.f32 %v1446, %v1514
        %v1516 = vpop.f32.mrf.mxu0
        %1517 = vdwg.mxu0
        %s1518 = scalar_lea.vmem %s7, 64
        %v1519 = vld [vmem:[%s1518] sm:$0xff]
        %v1520 = vld [vmem:[%s1518 + $0x8] sm:$0xff]
        %v1521 = vld [vmem:[%s1518 + $0x10] sm:$0xff]
        %v1522 = vld [vmem:[%s1518 + $0x18] sm:$0xff]
        %s1523 = scalar_lea.vmem %s8, 2
        %v1524 = vld [vmem:[%s1523] sm:$0x1]
        %v1526 = vlaneseq
        %v1527 = vshrl.u32 %v1526, 7
        %v1528 = vsub.s32 0, %v1527
        %v1529 = vrot.slane %v1524, %v1528
        %1531 = vmatprep.subr.mxu0 0.0
        %1532 = vmatpush1.msra.mxu0 0.0
        %1533 = vmatprep.subr.mxu0 0.0
        %1534 = vmatpush1.msra.mxu0 0.0
        %1535 = vmatprep.subr.mxu0 0.0
        %1536 = vmatpush1.msra.mxu0 0.0
        %1537 = vmatprep.subr.mxu0 0.0
        %1538 = vmatpush1.msra.mxu0 0.0
        %1539 = vmatprep.subr.mxu0 0.0
        %1540 = vmatpush1.msra.mxu0 0.0
        %1541 = vmatprep.subr.mxu0 0.0
        %1542 = vmatpush1.msra.mxu0 0.0
        %1543 = vmatprep.subr.mxu0 0.0
        %1544 = vmatpush1.msra.mxu0 0.0
        %1545 = vmatprep.subr.mxu0 0.0
        %1546 = vmatpush1.msra.mxu0 0.0
        %1547 = vmatprep.subr.mxu0 0.0
        %1548 = vmatpush1.msra.mxu0 0.0
        %1549 = vmatprep.subr.mxu0 0.0
        %1550 = vmatpush1.msra.mxu0 0.0
        %1551 = vmatprep.subr.mxu0 0.0
        %1552 = vmatpush1.msra.mxu0 0.0
        %1553 = vmatprep.subr.mxu0 0.0
        %1554 = vmatpush1.msra.mxu0 0.0
        %1555 = vmatprep.subr.mxu0 0.0
        %1556 = vmatpush1.msra.mxu0 %v1522
        %1557 = vmatprep.subr.mxu0 0.0
        %1558 = vmatpush1.msra.mxu0 %v1521
        %1559 = vmatprep.subr.mxu0 0.0
        %1560 = vmatpush1.msra.mxu0 %v1520
        %1561 = vmatprep.subr.mxu0 0.0
        %1562 = vmatpush1.msra.mxu0 %v1519
        %1563 = vmatprep.subr.mxu0 0.0
        %1564 = vmatpush2.msra.mxu0 0.0
        %1565 = vmatprep.subr.mxu0 0.0
        %1566 = vmatpush2.msra.mxu0 0.0
        %1567 = vmatprep.subr.mxu0 0.0
        %1568 = vmatpush2.msra.mxu0 0.0
        %1569 = vmatprep.subr.mxu0 0.0
        %1570 = vmatpush2.msra.mxu0 0.0
        %1571 = vmatprep.subr.mxu0 0.0
        %1572 = vmatpush2.msra.mxu0 0.0
        %1573 = vmatprep.subr.mxu0 0.0
        %1574 = vmatpush2.msra.mxu0 0.0
        %1575 = vmatprep.subr.mxu0 0.0
        %1576 = vmatpush2.msra.mxu0 0.0
        %1577 = vmatprep.subr.mxu0 0.0
        %1578 = vmatpush2.msra.mxu0 0.0
        %1579 = vmatprep.subr.mxu0 0.0
        %1580 = vmatpush2.msra.mxu0 0.0
        %1581 = vmatprep.subr.mxu0 0.0
        %1582 = vmatpush2.msra.mxu0 0.0
        %1583 = vmatprep.subr.mxu0 0.0
        %1584 = vmatpush2.msra.mxu0 0.0
        %1585 = vmatprep.subr.mxu0 0.0
        %1586 = vmatpush2.msra.mxu0 0.0
        %1587 = vmatprep.subr.mxu0 0.0
        %1588 = vmatpush2.msra.mxu0 0.0
        %1589 = vmatprep.subr.mxu0 0.0
        %1590 = vmatpush2.msra.mxu0 0.0
        %1591 = vmatprep.subr.mxu0 0.0
        %1592 = vmatpush2.msra.mxu0 0.0
        %1593 = vmatprep.subr.mxu0 0.0
        %1594 = vmatpush2.msra.mxu0 0.0
        %1595 = vmatprep.mubr.f32.mxu0 0.0
        %1596 = vmatmul.mubr.f32.gmra.mxu0 %v656
        %v1597 = vpop.f32.mrf.mxu0
        %v1598 = vadd.f32 %v1529, %v1597
        %v1599 = vpop.f32.mrf.mxu0
        %1600 = vdwg.mxu0
        %v1602 = vsel %vm728, %v1432, 0
        %v1605 = vsel %vm728, %v1515, 0
        %1607 = vmatprep.subr.mxu0 0.0
        %1608 = vmatpush1.xpose.msra.mxu0 0.0
        %1609 = vmatprep.subr.mxu0 0.0
        %1610 = vmatpush1.xpose.msra.mxu0 0.0
        %1611 = vmatprep.subr.mxu0 0.0
        %1612 = vmatpush1.xpose.msra.mxu0 0.0
        %1613 = vmatprep.subr.mxu0 0.0
        %1614 = vmatpush1.xpose.msra.mxu0 0.0
        %1615 = vmatprep.subr.mxu0 0.0
        %1616 = vmatpush1.xpose.msra.mxu0 0.0
        %1617 = vmatprep.subr.mxu0 0.0
        %1618 = vmatpush1.xpose.msra.mxu0 0.0
        %1619 = vmatprep.subr.mxu0 0.0
        %1620 = vmatpush1.xpose.msra.mxu0 0.0
        %1621 = vmatprep.subr.mxu0 0.0
        %1622 = vmatpush1.xpose.msra.mxu0 0.0
        %1623 = vmatprep.subr.mxu0 0.0
        %1624 = vmatpush1.xpose.msra.mxu0 0.0
        %1625 = vmatprep.subr.mxu0 0.0
        %1626 = vmatpush1.xpose.msra.mxu0 0.0
        %1627 = vmatprep.subr.mxu0 0.0
        %1628 = vmatpush1.xpose.msra.mxu0 0.0
        %1629 = vmatprep.subr.mxu0 0.0
        %1630 = vmatpush1.xpose.msra.mxu0 0.0
        %1631 = vmatprep.subr.mxu0 0.0
        %1632 = vmatpush1.xpose.msra.mxu0 0.0
        %1633 = vmatprep.subr.mxu0 0.0
        %1634 = vmatpush1.xpose.msra.mxu0 0.0
        %1635 = vmatprep.subr.mxu0 0.0
        %1636 = vmatpush1.xpose.msra.mxu0 0.0
        %1637 = vmatprep.subr.mxu0 0.0
        %1638 = vmatpush1.xpose.msra.mxu0 %v1605
        %1639 = vmatprep.subr.mxu0 0.0
        %1640 = vmatpush2.xpose.msra.mxu0 0.0
        %1641 = vmatprep.subr.mxu0 0.0
        %1642 = vmatpush2.xpose.msra.mxu0 0.0
        %1643 = vmatprep.subr.mxu0 0.0
        %1644 = vmatpush2.xpose.msra.mxu0 0.0
        %1645 = vmatprep.subr.mxu0 0.0
        %1646 = vmatpush2.xpose.msra.mxu0 0.0
        %1647 = vmatprep.subr.mxu0 0.0
        %1648 = vmatpush2.xpose.msra.mxu0 0.0
        %1649 = vmatprep.subr.mxu0 0.0
        %1650 = vmatpush2.xpose.msra.mxu0 0.0
        %1651 = vmatprep.subr.mxu0 0.0
        %1652 = vmatpush2.xpose.msra.mxu0 0.0
        %1653 = vmatprep.subr.mxu0 0.0
        %1654 = vmatpush2.xpose.msra.mxu0 0.0
        %1655 = vmatprep.subr.mxu0 0.0
        %1656 = vmatpush2.xpose.msra.mxu0 0.0
        %1657 = vmatprep.subr.mxu0 0.0
        %1658 = vmatpush2.xpose.msra.mxu0 0.0
        %1659 = vmatprep.subr.mxu0 0.0
        %1660 = vmatpush2.xpose.msra.mxu0 0.0
        %1661 = vmatprep.subr.mxu0 0.0
        %1662 = vmatpush2.xpose.msra.mxu0 0.0
        %1663 = vmatprep.subr.mxu0 0.0
        %1664 = vmatpush2.xpose.msra.mxu0 0.0
        %1665 = vmatprep.subr.mxu0 0.0
        %1666 = vmatpush2.xpose.msra.mxu0 0.0
        %1667 = vmatprep.subr.mxu0 0.0
        %1668 = vmatpush2.xpose.msra.mxu0 0.0
        %1669 = vmatprep.subr.mxu0 0.0
        %1670 = vmatpush2.xpose.msra.mxu0 0.0
        %1671 = vmatprep.mubr.f32.mxu0 0.0
        %1672 = vmatmul.mubr.f32.gmra.mxu0 %v1602
        %v1673 = vpop.f32.mrf.mxu0
        %v1674 = vadd.f32 0.0, %v1673
        %v1675 = vpop.f32.mrf.mxu0
        %1676 = vdwg.mxu0
        %v1678 = vsel %vm728, %v1674, 0
        %1680 = vmatprep.subr.mxu0 0.0
        %1681 = vmatpush1.msra.mxu0 0.0
        %1682 = vmatprep.subr.mxu0 0.0
        %1683 = vmatpush1.msra.mxu0 0.0
        %1684 = vmatprep.subr.mxu0 0.0
        %1685 = vmatpush1.msra.mxu0 0.0
        %1686 = vmatprep.subr.mxu0 0.0
        %1687 = vmatpush1.msra.mxu0 0.0
        %1688 = vmatprep.subr.mxu0 0.0
        %1689 = vmatpush1.msra.mxu0 0.0
        %1690 = vmatprep.subr.mxu0 0.0
        %1691 = vmatpush1.msra.mxu0 0.0
        %1692 = vmatprep.subr.mxu0 0.0
        %1693 = vmatpush1.msra.mxu0 0.0
        %1694 = vmatprep.subr.mxu0 0.0
        %1695 = vmatpush1.msra.mxu0 0.0
        %1696 = vmatprep.subr.mxu0 0.0
        %1697 = vmatpush1.msra.mxu0 0.0
        %1698 = vmatprep.subr.mxu0 0.0
        %1699 = vmatpush1.msra.mxu0 0.0
        %1700 = vmatprep.subr.mxu0 0.0
        %1701 = vmatpush1.msra.mxu0 0.0
        %1702 = vmatprep.subr.mxu0 0.0
        %1703 = vmatpush1.msra.mxu0 0.0
        %1704 = vmatprep.subr.mxu0 0.0
        %1705 = vmatpush1.msra.mxu0 0.0
        %1706 = vmatprep.subr.mxu0 0.0
        %1707 = vmatpush1.msra.mxu0 0.0
        %1708 = vmatprep.subr.mxu0 0.0
        %1709 = vmatpush1.msra.mxu0 0.0
        %1710 = vmatprep.subr.mxu0 0.0
        %1711 = vmatpush1.msra.mxu0 %v1598
        %1712 = vmatprep.subr.mxu0 0.0
        %1713 = vmatpush2.msra.mxu0 0.0
        %1714 = vmatprep.subr.mxu0 0.0
        %1715 = vmatpush2.msra.mxu0 0.0
        %1716 = vmatprep.subr.mxu0 0.0
        %1717 = vmatpush2.msra.mxu0 0.0
        %1718 = vmatprep.subr.mxu0 0.0
        %1719 = vmatpush2.msra.mxu0 0.0
        %1720 = vmatprep.subr.mxu0 0.0
        %1721 = vmatpush2.msra.mxu0 0.0
        %1722 = vmatprep.subr.mxu0 0.0
        %1723 = vmatpush2.msra.mxu0 0.0
        %1724 = vmatprep.subr.mxu0 0.0
        %1725 = vmatpush2.msra.mxu0 0.0
        %1726 = vmatprep.subr.mxu0 0.0
        %1727 = vmatpush2.msra.mxu0 0.0
        %1728 = vmatprep.subr.mxu0 0.0
        %1729 = vmatpush2.msra.mxu0 0.0
        %1730 = vmatprep.subr.mxu0 0.0
        %1731 = vmatpush2.msra.mxu0 0.0
        %1732 = vmatprep.subr.mxu0 0.0
        %1733 = vmatpush2.msra.mxu0 0.0
        %1734 = vmatprep.subr.mxu0 0.0
        %1735 = vmatpush2.msra.mxu0 0.0
        %1736 = vmatprep.subr.mxu0 0.0
        %1737 = vmatpush2.msra.mxu0 0.0
        %1738 = vmatprep.subr.mxu0 0.0
        %1739 = vmatpush2.msra.mxu0 0.0
        %1740 = vmatprep.subr.mxu0 0.0
        %1741 = vmatpush2.msra.mxu0 0.0
        %1742 = vmatprep.subr.mxu0 0.0
        %1743 = vmatpush2.msra.mxu0 0.0
        %1744 = vmatprep.mubr.f32.mxu0 0.0
        %1745 = vmatmul.mubr.f32.gmra.mxu0 %v1678
        %v1746 = vpop.f32.mrf.mxu0
        %v1747 = vadd.f32 0.0, %v1746
        %v1748 = vpop.f32.mrf.mxu0
        %1749 = vdwg.mxu0
        %v1750 = vmul.f32 %v1747, %v883
        %v1751 = vsel %vm728, %v1750, 0.0
        %1752 = vadd.xlane.f32.xlu0 %v1751
        %v1753 = vpop.xlane.xlu0 %1752
        %v1754 = vadd.f32 %v1753, %v894
        %v1755 = vsel %vm897, %v1754, -inf
        %v1756 = vrot.slane %v1755, 4
        %v1757 = vmax.f32 %v1755, %v1756
        %v1758 = vrot.slane %v1757, 2
        %v1759 = vmax.f32 %v1757, %v1758
        %v1760 = vrot.slane %v1759, 1
        %v1761 = vmax.f32 %v1759, %v1760
        %v1762 = vsub.f32 %v1754, %v1761
        %v1763 = vmul.f32 %v1762, 1.442695
        %v1764 = vpow.pop %v1763
        %v1765 = vsel %vm897, %v1764, 0.0
        %v1766 = vrot.slane %v1765, 4
        %v1767 = vadd.f32 %v1765, %v1766
        %v1768 = vrot.slane %v1767, 2
        %v1769 = vadd.f32 %v1767, %v1768
        %v1770 = vrot.slane %v1769, 1
        %v1771 = vadd.f32 %v1769, %v1770
        %v1772 = vrcp.pop %v1771
        %v1773 = vmul.f32 %v1764, %v1772
        %1775 = vset.pattern.permute.xlu0 0
        %1776 = vperm.xlu0 %1775, %v1773
        %v1777 = vpop.permute.xlu0 %1776
        %v1779 = vmul.f32 %v1777, %v1674
        %v1780 = vadd.f32 %v1351, %v1779
        %s1781 = scalar_lea.vmem %s3, 96
        %v1782 = vld [vmem:[%s1781] sm:$0xff]
        %v1783 = vld [vmem:[%s1781 + $0x8] sm:$0xff]
        %v1784 = vld [vmem:[%s1781 + $0x10] sm:$0xff]
        %v1785 = vld [vmem:[%s1781 + $0x18] sm:$0xff]
        %s1786 = scalar_lea.vmem %s4, 3
        %v1787 = vld [vmem:[%s1786] sm:$0x1]
        %v1789 = vlaneseq
        %v1790 = vshrl.u32 %v1789, 7
        %v1791 = vsub.s32 0, %v1790
        %v1792 = vrot.slane %v1787, %v1791
        %1794 = vmatprep.subr.mxu0 0.0
        %1795 = vmatpush1.msra.mxu0 0.0
        %1796 = vmatprep.subr.mxu0 0.0
        %1797 = vmatpush1.msra.mxu0 0.0
        %1798 = vmatprep.subr.mxu0 0.0
        %1799 = vmatpush1.msra.mxu0 0.0
        %1800 = vmatprep.subr.mxu0 0.0
        %1801 = vmatpush1.msra.mxu0 0.0
        %1802 = vmatprep.subr.mxu0 0.0
        %1803 = vmatpush1.msra.mxu0 0.0
        %1804 = vmatprep.subr.mxu0 0.0
        %1805 = vmatpush1.msra.mxu0 0.0
        %1806 = vmatprep.subr.mxu0 0.0
        %1807 = vmatpush1.msra.mxu0 0.0
        %1808 = vmatprep.subr.mxu0 0.0
        %1809 = vmatpush1.msra.mxu0 0.0
        %1810 = vmatprep.subr.mxu0 0.0
        %1811 = vmatpush1.msra.mxu0 0.0
        %1812 = vmatprep.subr.mxu0 0.0
        %1813 = vmatpush1.msra.mxu0 0.0
        %1814 = vmatprep.subr.mxu0 0.0
        %1815 = vmatpush1.msra.mxu0 0.0
        %1816 = vmatprep.subr.mxu0 0.0
        %1817 = vmatpush1.msra.mxu0 0.0
        %1818 = vmatprep.subr.mxu0 0.0
        %1819 = vmatpush1.msra.mxu0 %v1785
        %1820 = vmatprep.subr.mxu0 0.0
        %1821 = vmatpush1.msra.mxu0 %v1784
        %1822 = vmatprep.subr.mxu0 0.0
        %1823 = vmatpush1.msra.mxu0 %v1783
        %1824 = vmatprep.subr.mxu0 0.0
        %1825 = vmatpush1.msra.mxu0 %v1782
        %1826 = vmatprep.subr.mxu0 0.0
        %1827 = vmatpush2.msra.mxu0 0.0
        %1828 = vmatprep.subr.mxu0 0.0
        %1829 = vmatpush2.msra.mxu0 0.0
        %1830 = vmatprep.subr.mxu0 0.0
        %1831 = vmatpush2.msra.mxu0 0.0
        %1832 = vmatprep.subr.mxu0 0.0
        %1833 = vmatpush2.msra.mxu0 0.0
        %1834 = vmatprep.subr.mxu0 0.0
        %1835 = vmatpush2.msra.mxu0 0.0
        %1836 = vmatprep.subr.mxu0 0.0
        %1837 = vmatpush2.msra.mxu0 0.0
        %1838 = vmatprep.subr.mxu0 0.0
        %1839 = vmatpush2.msra.mxu0 0.0
        %1840 = vmatprep.subr.mxu0 0.0
        %1841 = vmatpush2.msra.mxu0 0.0
        %1842 = vmatprep.subr.mxu0 0.0
        %1843 = vmatpush2.msra.mxu0 0.0
        %1844 = vmatprep.subr.mxu0 0.0
        %1845 = vmatpush2.msra.mxu0 0.0
        %1846 = vmatprep.subr.mxu0 0.0
        %1847 = vmatpush2.msra.mxu0 0.0
        %1848 = vmatprep.subr.mxu0 0.0
        %1849 = vmatpush2.msra.mxu0 0.0
        %1850 = vmatprep.subr.mxu0 0.0
        %1851 = vmatpush2.msra.mxu0 0.0
        %1852 = vmatprep.subr.mxu0 0.0
        %1853 = vmatpush2.msra.mxu0 0.0
        %1854 = vmatprep.subr.mxu0 0.0
        %1855 = vmatpush2.msra.mxu0 0.0
        %1856 = vmatprep.subr.mxu0 0.0
        %1857 = vmatpush2.msra.mxu0 0.0
        %1858 = vmatprep.mubr.f32.mxu0 0.0
        %1859 = vmatmul.mubr.f32.gmra.mxu0 %v488
        %v1860 = vpop.f32.mrf.mxu0
        %v1861 = vadd.f32 %v1792, %v1860
        %v1862 = vpop.f32.mrf.mxu0
        %1863 = vdwg.mxu0
        %s1864 = scalar_lea.vmem %s5, 96
        %v1865 = vld [vmem:[%s1864] sm:$0xff]
        %v1866 = vld [vmem:[%s1864 + $0x8] sm:$0xff]
        %v1867 = vld [vmem:[%s1864 + $0x10] sm:$0xff]
        %v1868 = vld [vmem:[%s1864 + $0x18] sm:$0xff]
        %s1869 = scalar_lea.vmem %s6, 3
        %v1870 = vld [vmem:[%s1869] sm:$0x1]
        %v1872 = vlaneseq
        %v1873 = vshrl.u32 %v1872, 7
        %v1874 = vsub.s32 0, %v1873
        %v1875 = vrot.slane %v1870, %v1874
        %1877 = vmatprep.subr.mxu0 0.0
        %1878 = vmatpush1.msra.mxu0 0.0
        %1879 = vmatprep.subr.mxu0 0.0
        %1880 = vmatpush1.msra.mxu0 0.0
        %1881 = vmatprep.subr.mxu0 0.0
        %1882 = vmatpush1.msra.mxu0 0.0
        %1883 = vmatprep.subr.mxu0 0.0
        %1884 = vmatpush1.msra.mxu0 0.0
        %1885 = vmatprep.subr.mxu0 0.0
        %1886 = vmatpush1.msra.mxu0 0.0
        %1887 = vmatprep.subr.mxu0 0.0
        %1888 = vmatpush1.msra.mxu0 0.0
        %1889 = vmatprep.subr.mxu0 0.0
        %1890 = vmatpush1.msra.mxu0 0.0
        %1891 = vmatprep.subr.mxu0 0.0
        %1892 = vmatpush1.msra.mxu0 0.0
        %1893 = vmatprep.subr.mxu0 0.0
        %1894 = vmatpush1.msra.mxu0 0.0
        %1895 = vmatprep.subr.mxu0 0.0
        %1896 = vmatpush1.msra.mxu0 0.0
        %1897 = vmatprep.subr.mxu0 0.0
        %1898 = vmatpush1.msra.mxu0 0.0
        %1899 = vmatprep.subr.mxu0 0.0
        %1900 = vmatpush1.msra.mxu0 0.0
        %1901 = vmatprep.subr.mxu0 0.0
        %1902 = vmatpush1.msra.mxu0 %v1868
        %1903 = vmatprep.subr.mxu0 0.0
        %1904 = vmatpush1.msra.mxu0 %v1867
        %1905 = vmatprep.subr.mxu0 0.0
        %1906 = vmatpush1.msra.mxu0 %v1866
        %1907 = vmatprep.subr.mxu0 0.0
        %1908 = vmatpush1.msra.mxu0 %v1865
        %1909 = vmatprep.subr.mxu0 0.0
        %1910 = vmatpush2.msra.mxu0 0.0
        %1911 = vmatprep.subr.mxu0 0.0
        %1912 = vmatpush2.msra.mxu0 0.0
        %1913 = vmatprep.subr.mxu0 0.0
        %1914 = vmatpush2.msra.mxu0 0.0
        %1915 = vmatprep.subr.mxu0 0.0
        %1916 = vmatpush2.msra.mxu0 0.0
        %1917 = vmatprep.subr.mxu0 0.0
        %1918 = vmatpush2.msra.mxu0 0.0
        %1919 = vmatprep.subr.mxu0 0.0
        %1920 = vmatpush2.msra.mxu0 0.0
        %1921 = vmatprep.subr.mxu0 0.0
        %1922 = vmatpush2.msra.mxu0 0.0
        %1923 = vmatprep.subr.mxu0 0.0
        %1924 = vmatpush2.msra.mxu0 0.0
        %1925 = vmatprep.subr.mxu0 0.0
        %1926 = vmatpush2.msra.mxu0 0.0
        %1927 = vmatprep.subr.mxu0 0.0
        %1928 = vmatpush2.msra.mxu0 0.0
        %1929 = vmatprep.subr.mxu0 0.0
        %1930 = vmatpush2.msra.mxu0 0.0
        %1931 = vmatprep.subr.mxu0 0.0
        %1932 = vmatpush2.msra.mxu0 0.0
        %1933 = vmatprep.subr.mxu0 0.0
        %1934 = vmatpush2.msra.mxu0 0.0
        %1935 = vmatprep.subr.mxu0 0.0
        %1936 = vmatpush2.msra.mxu0 0.0
        %1937 = vmatprep.subr.mxu0 0.0
        %1938 = vmatpush2.msra.mxu0 0.0
        %1939 = vmatprep.subr.mxu0 0.0
        %1940 = vmatpush2.msra.mxu0 0.0
        %1941 = vmatprep.mubr.f32.mxu0 0.0
        %1942 = vmatmul.mubr.f32.gmra.mxu0 %v572
        %v1943 = vpop.f32.mrf.mxu0
        %v1944 = vadd.f32 %v1875, %v1943
        %v1945 = vpop.f32.mrf.mxu0
        %1946 = vdwg.mxu0
        %s1947 = scalar_lea.vmem %s7, 96
        %v1948 = vld [vmem:[%s1947] sm:$0xff]
        %v1949 = vld [vmem:[%s1947 + $0x8] sm:$0xff]
        %v1950 = vld [vmem:[%s1947 + $0x10] sm:$0xff]
        %v1951 = vld [vmem:[%s1947 + $0x18] sm:$0xff]
        %s1952 = scalar_lea.vmem %s8, 3
        %v1953 = vld [vmem:[%s1952] sm:$0x1]
        %v1955 = vlaneseq
        %v1956 = vshrl.u32 %v1955, 7
        %v1957 = vsub.s32 0, %v1956
        %v1958 = vrot.slane %v1953, %v1957
        %1960 = vmatprep.subr.mxu0 0.0
        %1961 = vmatpush1.msra.mxu0 0.0
        %1962 = vmatprep.subr.mxu0 0.0
        %1963 = vmatpush1.msra.mxu0 0.0
        %1964 = vmatprep.subr.mxu0 0.0
        %1965 = vmatpush1.msra.mxu0 0.0
        %1966 = vmatprep.subr.mxu0 0.0
        %1967 = vmatpush1.msra.mxu0 0.0
        %1968 = vmatprep.subr.mxu0 0.0
        %1969 = vmatpush1.msra.mxu0 0.0
        %1970 = vmatprep.subr.mxu0 0.0
        %1971 = vmatpush1.msra.mxu0 0.0
        %1972 = vmatprep.subr.mxu0 0.0
        %1973 = vmatpush1.msra.mxu0 0.0
        %1974 = vmatprep.subr.mxu0 0.0
        %1975 = vmatpush1.msra.mxu0 0.0
        %1976 = vmatprep.subr.mxu0 0.0
        %1977 = vmatpush1.msra.mxu0 0.0
        %1978 = vmatprep.subr.mxu0 0.0
        %1979 = vmatpush1.msra.mxu0 0.0
        %1980 = vmatprep.subr.mxu0 0.0
        %1981 = vmatpush1.msra.mxu0 0.0
        %1982 = vmatprep.subr.mxu0 0.0
        %1983 = vmatpush1.msra.mxu0 0.0
        %1984 = vmatprep.subr.mxu0 0.0
        %1985 = vmatpush1.msra.mxu0 %v1951
        %1986 = vmatprep.subr.mxu0 0.0
        %1987 = vmatpush1.msra.mxu0 %v1950
        %1988 = vmatprep.subr.mxu0 0.0
        %1989 = vmatpush1.msra.mxu0 %v1949
        %1990 = vmatprep.subr.mxu0 0.0
        %1991 = vmatpush1.msra.mxu0 %v1948
        %1992 = vmatprep.subr.mxu0 0.0
        %1993 = vmatpush2.msra.mxu0 0.0
        %1994 = vmatprep.subr.mxu0 0.0
        %1995 = vmatpush2.msra.mxu0 0.0
        %1996 = vmatprep.subr.mxu0 0.0
        %1997 = vmatpush2.msra.mxu0 0.0
        %1998 = vmatprep.subr.mxu0 0.0
        %1999 = vmatpush2.msra.mxu0 0.0
        %2000 = vmatprep.subr.mxu0 0.0
        %2001 = vmatpush2.msra.mxu0 0.0
        %2002 = vmatprep.subr.mxu0 0.0
        %2003 = vmatpush2.msra.mxu0 0.0
        %2004 = vmatprep.subr.mxu0 0.0
        %2005 = vmatpush2.msra.mxu0 0.0
        %2006 = vmatprep.subr.mxu0 0.0
        %2007 = vmatpush2.msra.mxu0 0.0
        %2008 = vmatprep.subr.mxu0 0.0
        %2009 = vmatpush2.msra.mxu0 0.0
        %2010 = vmatprep.subr.mxu0 0.0
        %2011 = vmatpush2.msra.mxu0 0.0
        %2012 = vmatprep.subr.mxu0 0.0
        %2013 = vmatpush2.msra.mxu0 0.0
        %2014 = vmatprep.subr.mxu0 0.0
        %2015 = vmatpush2.msra.mxu0 0.0
        %2016 = vmatprep.subr.mxu0 0.0
        %2017 = vmatpush2.msra.mxu0 0.0
        %2018 = vmatprep.subr.mxu0 0.0
        %2019 = vmatpush2.msra.mxu0 0.0
        %2020 = vmatprep.subr.mxu0 0.0
        %2021 = vmatpush2.msra.mxu0 0.0
        %2022 = vmatprep.subr.mxu0 0.0
        %2023 = vmatpush2.msra.mxu0 0.0
        %2024 = vmatprep.mubr.f32.mxu0 0.0
        %2025 = vmatmul.mubr.f32.gmra.mxu0 %v656
        %v2026 = vpop.f32.mrf.mxu0
        %v2027 = vadd.f32 %v1958, %v2026
        %v2028 = vpop.f32.mrf.mxu0
        %2029 = vdwg.mxu0
        %v2031 = vsel %vm728, %v1861, 0
        %v2034 = vsel %vm728, %v1944, 0
        %2036 = vmatprep.subr.mxu0 0.0
        %2037 = vmatpush1.xpose.msra.mxu0 0.0
        %2038 = vmatprep.subr.mxu0 0.0
        %2039 = vmatpush1.xpose.msra.mxu0 0.0
        %2040 = vmatprep.subr.mxu0 0.0
        %2041 = vmatpush1.xpose.msra.mxu0 0.0
        %2042 = vmatprep.subr.mxu0 0.0
        %2043 = vmatpush1.xpose.msra.mxu0 0.0
        %2044 = vmatprep.subr.mxu0 0.0
        %2045 = vmatpush1.xpose.msra.mxu0 0.0
        %2046 = vmatprep.subr.mxu0 0.0
        %2047 = vmatpush1.xpose.msra.mxu0 0.0
        %2048 = vmatprep.subr.mxu0 0.0
        %2049 = vmatpush1.xpose.msra.mxu0 0.0
        %2050 = vmatprep.subr.mxu0 0.0
        %2051 = vmatpush1.xpose.msra.mxu0 0.0
        %2052 = vmatprep.subr.mxu0 0.0
        %2053 = vmatpush1.xpose.msra.mxu0 0.0
        %2054 = vmatprep.subr.mxu0 0.0
        %2055 = vmatpush1.xpose.msra.mxu0 0.0
        %2056 = vmatprep.subr.mxu0 0.0
        %2057 = vmatpush1.xpose.msra.mxu0 0.0
        %2058 = vmatprep.subr.mxu0 0.0
        %2059 = vmatpush1.xpose.msra.mxu0 0.0
        %2060 = vmatprep.subr.mxu0 0.0
        %2061 = vmatpush1.xpose.msra.mxu0 0.0
        %2062 = vmatprep.subr.mxu0 0.0
        %2063 = vmatpush1.xpose.msra.mxu0 0.0
        %2064 = vmatprep.subr.mxu0 0.0
        %2065 = vmatpush1.xpose.msra.mxu0 0.0
        %2066 = vmatprep.subr.mxu0 0.0
        %2067 = vmatpush1.xpose.msra.mxu0 %v2034
        %2068 = vmatprep.subr.mxu0 0.0
        %2069 = vmatpush2.xpose.msra.mxu0 0.0
        %2070 = vmatprep.subr.mxu0 0.0
        %2071 = vmatpush2.xpose.msra.mxu0 0.0
        %2072 = vmatprep.subr.mxu0 0.0
        %2073 = vmatpush2.xpose.msra.mxu0 0.0
        %2074 = vmatprep.subr.mxu0 0.0
        %2075 = vmatpush2.xpose.msra.mxu0 0.0
        %2076 = vmatprep.subr.mxu0 0.0
        %2077 = vmatpush2.xpose.msra.mxu0 0.0
        %2078 = vmatprep.subr.mxu0 0.0
        %2079 = vmatpush2.xpose.msra.mxu0 0.0
        %2080 = vmatprep.subr.mxu0 0.0
        %2081 = vmatpush2.xpose.msra.mxu0 0.0
        %2082 = vmatprep.subr.mxu0 0.0
        %2083 = vmatpush2.xpose.msra.mxu0 0.0
        %2084 = vmatprep.subr.mxu0 0.0
        %2085 = vmatpush2.xpose.msra.mxu0 0.0
        %2086 = vmatprep.subr.mxu0 0.0
        %2087 = vmatpush2.xpose.msra.mxu0 0.0
        %2088 = vmatprep.subr.mxu0 0.0
        %2089 = vmatpush2.xpose.msra.mxu0 0.0
        %2090 = vmatprep.subr.mxu0 0.0
        %2091 = vmatpush2.xpose.msra.mxu0 0.0
        %2092 = vmatprep.subr.mxu0 0.0
        %2093 = vmatpush2.xpose.msra.mxu0 0.0
        %2094 = vmatprep.subr.mxu0 0.0
        %2095 = vmatpush2.xpose.msra.mxu0 0.0
        %2096 = vmatprep.subr.mxu0 0.0
        %2097 = vmatpush2.xpose.msra.mxu0 0.0
        %2098 = vmatprep.subr.mxu0 0.0
        %2099 = vmatpush2.xpose.msra.mxu0 0.0
        %2100 = vmatprep.mubr.f32.mxu0 0.0
        %2101 = vmatmul.mubr.f32.gmra.mxu0 %v2031
        %v2102 = vpop.f32.mrf.mxu0
        %v2103 = vadd.f32 0.0, %v2102
        %v2104 = vpop.f32.mrf.mxu0
        %2105 = vdwg.mxu0
        %v2107 = vsel %vm728, %v2103, 0
        %2109 = vmatprep.subr.mxu0 0.0
        %2110 = vmatpush1.msra.mxu0 0.0
        %2111 = vmatprep.subr.mxu0 0.0
        %2112 = vmatpush1.msra.mxu0 0.0
        %2113 = vmatprep.subr.mxu0 0.0
        %2114 = vmatpush1.msra.mxu0 0.0
        %2115 = vmatprep.subr.mxu0 0.0
        %2116 = vmatpush1.msra.mxu0 0.0
        %2117 = vmatprep.subr.mxu0 0.0
        %2118 = vmatpush1.msra.mxu0 0.0
        %2119 = vmatprep.subr.mxu0 0.0
        %2120 = vmatpush1.msra.mxu0 0.0
        %2121 = vmatprep.subr.mxu0 0.0
        %2122 = vmatpush1.msra.mxu0 0.0
        %2123 = vmatprep.subr.mxu0 0.0
        %2124 = vmatpush1.msra.mxu0 0.0
        %2125 = vmatprep.subr.mxu0 0.0
        %2126 = vmatpush1.msra.mxu0 0.0
        %2127 = vmatprep.subr.mxu0 0.0
        %2128 = vmatpush1.msra.mxu0 0.0
        %2129 = vmatprep.subr.mxu0 0.0
        %2130 = vmatpush1.msra.mxu0 0.0
        %2131 = vmatprep.subr.mxu0 0.0
        %2132 = vmatpush1.msra.mxu0 0.0
        %2133 = vmatprep.subr.mxu0 0.0
        %2134 = vmatpush1.msra.mxu0 0.0
        %2135 = vmatprep.subr.mxu0 0.0
        %2136 = vmatpush1.msra.mxu0 0.0
        %2137 = vmatprep.subr.mxu0 0.0
        %2138 = vmatpush1.msra.mxu0 0.0
        %2139 = vmatprep.subr.mxu0 0.0
        %2140 = vmatpush1.msra.mxu0 %v2027
        %2141 = vmatprep.subr.mxu0 0.0
        %2142 = vmatpush2.msra.mxu0 0.0
        %2143 = vmatprep.subr.mxu0 0.0
        %2144 = vmatpush2.msra.mxu0 0.0
        %2145 = vmatprep.subr.mxu0 0.0
        %2146 = vmatpush2.msra.mxu0 0.0
        %2147 = vmatprep.subr.mxu0 0.0
        %2148 = vmatpush2.msra.mxu0 0.0
        %2149 = vmatprep.subr.mxu0 0.0
        %2150 = vmatpush2.msra.mxu0 0.0
        %2151 = vmatprep.subr.mxu0 0.0
        %2152 = vmatpush2.msra.mxu0 0.0
        %2153 = vmatprep.subr.mxu0 0.0
        %2154 = vmatpush2.msra.mxu0 0.0
        %2155 = vmatprep.subr.mxu0 0.0
        %2156 = vmatpush2.msra.mxu0 0.0
        %2157 = vmatprep.subr.mxu0 0.0
        %2158 = vmatpush2.msra.mxu0 0.0
        %2159 = vmatprep.subr.mxu0 0.0
        %2160 = vmatpush2.msra.mxu0 0.0
        %2161 = vmatprep.subr.mxu0 0.0
        %2162 = vmatpush2.msra.mxu0 0.0
        %2163 = vmatprep.subr.mxu0 0.0
        %2164 = vmatpush2.msra.mxu0 0.0
        %2165 = vmatprep.subr.mxu0 0.0
        %2166 = vmatpush2.msra.mxu0 0.0
        %2167 = vmatprep.subr.mxu0 0.0
        %2168 = vmatpush2.msra.mxu0 0.0
        %2169 = vmatprep.subr.mxu0 0.0
        %2170 = vmatpush2.msra.mxu0 0.0
        %2171 = vmatprep.subr.mxu0 0.0
        %2172 = vmatpush2.msra.mxu0 0.0
        %2173 = vmatprep.mubr.f32.mxu0 0.0
        %2174 = vmatmul.mubr.f32.gmra.mxu0 %v2107
        %v2175 = vpop.f32.mrf.mxu0
        %v2176 = vadd.f32 0.0, %v2175
        %v2177 = vpop.f32.mrf.mxu0
        %2178 = vdwg.mxu0
        %v2179 = vmul.f32 %v2176, %v883
        %v2180 = vsel %vm728, %v2179, 0.0
        %2181 = vadd.xlane.f32.xlu0 %v2180
        %v2182 = vpop.xlane.xlu0 %2181
        %v2183 = vadd.f32 %v2182, %v894
        %v2184 = vsel %vm897, %v2183, -inf
        %v2185 = vrot.slane %v2184, 4
        %v2186 = vmax.f32 %v2184, %v2185
        %v2187 = vrot.slane %v2186, 2
        %v2188 = vmax.f32 %v2186, %v2187
        %v2189 = vrot.slane %v2188, 1
        %v2190 = vmax.f32 %v2188, %v2189
        %v2191 = vsub.f32 %v2183, %v2190
        %v2192 = vmul.f32 %v2191, 1.442695
        %v2193 = vpow.pop %v2192
        %v2194 = vsel %vm897, %v2193, 0.0
        %v2195 = vrot.slane %v2194, 4
        %v2196 = vadd.f32 %v2194, %v2195
        %v2197 = vrot.slane %v2196, 2
        %v2198 = vadd.f32 %v2196, %v2197
        %v2199 = vrot.slane %v2198, 1
        %v2200 = vadd.f32 %v2198, %v2199
        %v2201 = vrcp.pop %v2200
        %v2202 = vmul.f32 %v2193, %v2201
        %2204 = vset.pattern.permute.xlu0 0
        %2205 = vperm.xlu0 %2204, %v2202
        %v2206 = vpop.permute.xlu0 %2205
        %v2208 = vmul.f32 %v2206, %v2103
        %v2209 = vadd.f32 %v1780, %v2208
        %v2211 = vsel %vm728, %v2209, 0
        %2213 = vmatprep.subr.mxu0 0.0
        %2214 = vmatpush1.msra.mxu0 0.0
        %2215 = vmatprep.subr.mxu0 0.0
        %2216 = vmatpush1.msra.mxu0 0.0
        %2217 = vmatprep.subr.mxu0 0.0
        %2218 = vmatpush1.msra.mxu0 0.0
        %2219 = vmatprep.subr.mxu0 0.0
        %2220 = vmatpush1.msra.mxu0 0.0
        %2221 = vmatprep.subr.mxu0 0.0
        %2222 = vmatpush1.msra.mxu0 0.0
        %2223 = vmatprep.subr.mxu0 0.0
        %2224 = vmatpush1.msra.mxu0 0.0
        %2225 = vmatprep.subr.mxu0 0.0
        %2226 = vmatpush1.msra.mxu0 0.0
        %2227 = vmatprep.subr.mxu0 0.0
        %2228 = vmatpush1.msra.mxu0 0.0
        %2229 = vmatprep.subr.mxu0 0.0
        %2230 = vmatpush1.msra.mxu0 0.0
        %2231 = vmatprep.subr.mxu0 0.0
        %2232 = vmatpush1.msra.mxu0 0.0
        %2233 = vmatprep.subr.mxu0 0.0
        %2234 = vmatpush1.msra.mxu0 0.0
        %2235 = vmatprep.subr.mxu0 0.0
        %2236 = vmatpush1.msra.mxu0 0.0
        %2237 = vmatprep.subr.mxu0 0.0
        %2238 = vmatpush1.msra.mxu0 0.0
        %2239 = vmatprep.subr.mxu0 0.0
        %2240 = vmatpush1.msra.mxu0 0.0
        %2241 = vmatprep.subr.mxu0 0.0
        %2242 = vmatpush1.msra.mxu0 0.0
        %2243 = vmatprep.subr.mxu0 0.0
        %2244 = vmatpush1.msra.mxu0 %v474
        %2245 = vmatprep.subr.mxu0 0.0
        %2246 = vmatpush2.msra.mxu0 0.0
        %2247 = vmatprep.subr.mxu0 0.0
        %2248 = vmatpush2.msra.mxu0 0.0
        %2249 = vmatprep.subr.mxu0 0.0
        %2250 = vmatpush2.msra.mxu0 0.0
        %2251 = vmatprep.subr.mxu0 0.0
        %2252 = vmatpush2.msra.mxu0 0.0
        %2253 = vmatprep.subr.mxu0 0.0
        %2254 = vmatpush2.msra.mxu0 0.0
        %2255 = vmatprep.subr.mxu0 0.0
        %2256 = vmatpush2.msra.mxu0 0.0
        %2257 = vmatprep.subr.mxu0 0.0
        %2258 = vmatpush2.msra.mxu0 0.0
        %2259 = vmatprep.subr.mxu0 0.0
        %2260 = vmatpush2.msra.mxu0 0.0
        %2261 = vmatprep.subr.mxu0 0.0
        %2262 = vmatpush2.msra.mxu0 0.0
        %2263 = vmatprep.subr.mxu0 0.0
        %2264 = vmatpush2.msra.mxu0 0.0
        %2265 = vmatprep.subr.mxu0 0.0
        %2266 = vmatpush2.msra.mxu0 0.0
        %2267 = vmatprep.subr.mxu0 0.0
        %2268 = vmatpush2.msra.mxu0 0.0
        %2269 = vmatprep.subr.mxu0 0.0
        %2270 = vmatpush2.msra.mxu0 0.0
        %2271 = vmatprep.subr.mxu0 0.0
        %2272 = vmatpush2.msra.mxu0 0.0
        %2273 = vmatprep.subr.mxu0 0.0
        %2274 = vmatpush2.msra.mxu0 0.0
        %2275 = vmatprep.subr.mxu0 0.0
        %2276 = vmatpush2.msra.mxu0 0.0
        %2277 = vmatprep.mubr.f32.mxu0 0.0
        %2278 = vmatmul.mubr.f32.gmra.mxu0 %v2211
        %v2279 = vpop.f32.mrf.mxu0
        %v2280 = vadd.f32 0.0, %v2279
        %v2281 = vpop.f32.mrf.mxu0
        %2282 = vdwg.mxu0
        %v2283 = vld [vmem:[%s11] sm:$0xff]
        %v2284 = vld [vmem:[%s11 + $0x8] sm:$0xff]
        %v2285 = vld [vmem:[%s11 + $0x10] sm:$0xff]
        %v2286 = vld [vmem:[%s11 + $0x18] sm:$0xff]
        %v2287 = vld [vmem:[%s12] sm:$0x1]
        %v2289 = vlaneseq
        %v2290 = vshrl.u32 %v2289, 7
        %v2291 = vsub.s32 0, %v2290
        %v2292 = vrot.slane %v2287, %v2291
        %v2295 = vsel %vm486, %v2280, 0
        %2297 = vmatprep.subr.mxu0 0.0
        %2298 = vmatpush1.msra.mxu0 0.0
        %2299 = vmatprep.subr.mxu0 0.0
        %2300 = vmatpush1.msra.mxu0 0.0
        %2301 = vmatprep.subr.mxu0 0.0
        %2302 = vmatpush1.msra.mxu0 0.0
        %2303 = vmatprep.subr.mxu0 0.0
        %2304 = vmatpush1.msra.mxu0 0.0
        %2305 = vmatprep.subr.mxu0 0.0
        %2306 = vmatpush1.msra.mxu0 0.0
        %2307 = vmatprep.subr.mxu0 0.0
        %2308 = vmatpush1.msra.mxu0 0.0
        %2309 = vmatprep.subr.mxu0 0.0
        %2310 = vmatpush1.msra.mxu0 0.0
        %2311 = vmatprep.subr.mxu0 0.0
        %2312 = vmatpush1.msra.mxu0 0.0
        %2313 = vmatprep.subr.mxu0 0.0
        %2314 = vmatpush1.msra.mxu0 0.0
        %2315 = vmatprep.subr.mxu0 0.0
        %2316 = vmatpush1.msra.mxu0 0.0
        %2317 = vmatprep.subr.mxu0 0.0
        %2318 = vmatpush1.msra.mxu0 0.0
        %2319 = vmatprep.subr.mxu0 0.0
        %2320 = vmatpush1.msra.mxu0 0.0
        %2321 = vmatprep.subr.mxu0 0.0
        %2322 = vmatpush1.msra.mxu0 %v2286
        %2323 = vmatprep.subr.mxu0 0.0
        %2324 = vmatpush1.msra.mxu0 %v2285
        %2325 = vmatprep.subr.mxu0 0.0
        %2326 = vmatpush1.msra.mxu0 %v2284
        %2327 = vmatprep.subr.mxu0 0.0
        %2328 = vmatpush1.msra.mxu0 %v2283
        %2329 = vmatprep.subr.mxu0 0.0
        %2330 = vmatpush2.msra.mxu0 0.0
        %2331 = vmatprep.subr.mxu0 0.0
        %2332 = vmatpush2.msra.mxu0 0.0
        %2333 = vmatprep.subr.mxu0 0.0
        %2334 = vmatpush2.msra.mxu0 0.0
        %2335 = vmatprep.subr.mxu0 0.0
        %2336 = vmatpush2.msra.mxu0 0.0
        %2337 = vmatprep.subr.mxu0 0.0
        %2338 = vmatpush2.msra.mxu0 0.0
        %2339 = vmatprep.subr.mxu0 0.0
        %2340 = vmatpush2.msra.mxu0 0.0
        %2341 = vmatprep.subr.mxu0 0.0
        %2342 = vmatpush2.msra.mxu0 0.0
        %2343 = vmatprep.subr.mxu0 0.0
        %2344 = vmatpush2.msra.mxu0 0.0
        %2345 = vmatprep.subr.mxu0 0.0
        %2346 = vmatpush2.msra.mxu0 0.0
        %2347 = vmatprep.subr.mxu0 0.0
        %2348 = vmatpush2.msra.mxu0 0.0
        %2349 = vmatprep.subr.mxu0 0.0
        %2350 = vmatpush2.msra.mxu0 0.0
        %2351 = vmatprep.subr.mxu0 0.0
        %2352 = vmatpush2.msra.mxu0 0.0
        %2353 = vmatprep.subr.mxu0 0.0
        %2354 = vmatpush2.msra.mxu0 0.0
        %2355 = vmatprep.subr.mxu0 0.0
        %2356 = vmatpush2.msra.mxu0 0.0
        %2357 = vmatprep.subr.mxu0 0.0
        %2358 = vmatpush2.msra.mxu0 0.0
        %2359 = vmatprep.subr.mxu0 0.0
        %2360 = vmatpush2.msra.mxu0 0.0
        %2361 = vmatprep.mubr.f32.mxu0 0.0
        %2362 = vmatmul.mubr.f32.gmra.mxu0 %v2295
        %v2363 = vpop.f32.mrf.mxu0
        %v2364 = vadd.f32 %v2292, %v2363
        %v2365 = vpop.f32.mrf.mxu0
        %2366 = vdwg.mxu0
        %2367 = vst.msk [vmem:[%s459] sm:$0xff] %vm486, %v2364
        %s2368 = sand.u32 %s325, 1
        %s2369 = scalar_lea.sflag [#allocation4], %s2368
        %s2370 = sand.u32 %s325, 1
        %s2371 = smul.addr %s2370, 8
        %s2372 = scalar_lea.vmem [#allocation3], %s2371
        // Predicated region
        $region73: #{tpu_custom_call.1} parent=71 // pred_check
          %p2373 = pneg %p335
        $region74: #{tpu_custom_call.1} parent=71 // pred_check_branch
          %2375 = sbr.rel (%p2373) target = $region76
        $region75: #{tpu_custom_call.1} parent=71 // pred_region
          %s2377 = ssub.s32 128, 128
          %2378 = vsyncadd %s2369, %s2377
          %s2379 = smul.addr %s29, 128
          %s2380 = scalar_lea.hbm %s13, %s2379
          %s2382 = sshll.u32 %s2372, 4
          %s2383 = int_to_ptr.vmem [resolvable:$true] %s2382
          %2385 = dma.vmem_to_hbm [thread:$0]  %s2383, 128, %s2380, %s2369
        $region76: #{tpu_custom_call.1} parent=71 // pred_fallthru
          _
      $region72: #{tpu_custom_call.1} parent=5 // pred_fallthru
        _
      %p2386 = scmp.le.s32.totalorder 2, %s24
      // Predicated region
      $region77: #{tpu_custom_call.1} parent=5 // pred_check
        %p2387 = pneg %p2386
      $region78: #{tpu_custom_call.1} parent=5 // pred_check_branch
        %2389 = sbr.rel (%p2387) target = $region80
      $region79: #{tpu_custom_call.1} parent=5 // pred_region
        %s2390 = ssub.s32 %s24, 2
        // Predicated region
        $region81: #{tpu_custom_call.1} parent=79 // pred_check
          %p2391 = pneg %p341
        $region82: #{tpu_custom_call.1} parent=79 // pred_check_branch
          %2393 = sbr.rel (%p2391) target = $region84
        $region83: #{tpu_custom_call.1} parent=79 // pred_region
          %s2394 = sand.u32 %s326, 1
          %s2395 = scalar_lea.sflag [#allocation4], %s2394
          %s2396 = sand.u32 %s326, 1
          %s2397 = smul.addr %s2396, 8
          %s2398 = scalar_lea.vmem [#allocation3], %s2397
          %2399 = dma.done %s2395, 128
        $region84: #{tpu_custom_call.1} parent=79 // pred_fallthru
          _
      $region80: #{tpu_custom_call.1} parent=5 // pred_fallthru
        _
    $region6: #{tpu_custom_call.1} parent=1 // loop_footer
      %s28 = sadd.s32 1, %s24
    $region7: #{tpu_custom_call.1} parent=1 // loop_footer_branch
      %23 = sbr.rel target = $region3
    $region8: #{tpu_custom_call.1} parent=1 // loop_exit
      _
    %2400 = vsyncpa [#allocation4], 1
    %s2401 = scalar_lea.sflag [#allocation4], 1
    %2402 = vsyncpa %s2401, 1

</llo_original>
